<compile_context>
chip_gen: v7x
topology: tpu7x:2x2x1
jax: 0.10.0
libtpu: 0.0.40
codegen_flags: <defaults>
</compile_context>

<pallas_src>
import functools

import numpy as np
import jax
import jax.numpy as jnp
from jax.experimental import pallas as pl
from jax.experimental.pallas import tpu as pltpu


# ----------------------------------------------------------------------------
# Packing helpers (run once, outside the per-call forward)
# ----------------------------------------------------------------------------
def _round_up(x, m):
    return (x + m - 1) // m * m


def _tap_select(kind, k, s, p, size_in, size_out):
    """0/1 selection matrices, one per tap: (k, size_out, size_in)."""
    sel = np.zeros((k, size_out, size_in), np.float32)
    if kind == "conv":            # out o reads in i = o*s + kk - p
        for kk in range(k):
            for o in range(size_out):
                i = o * s + kk - p
                if 0 <= i < size_in:
                    sel[kk, o, i] = 1.0
    else:                         # convT: in i writes out o = i*s + kk - p
        for kk in range(k):
            for i in range(size_in):
                o = i * s + kk - p
                if 0 <= o < size_out:
                    sel[kk, o, i] = 1.0
    return sel


def _conv_q_stacked(w, k, s, p, Wi, Wo):
    """Stride-2 Conv2d: horizontal taps folded into a tap-stacked matmul weight.

    Q[kh*Ci*Wi + ci*Wi + wi, co*Wo + wo] = sum_kw sel[kw,wo,wi] * W[co,ci,kh,kw]
    """
    w = np.asarray(w, np.float32)            # (Co, Ci, kh, kw)
    Co, Ci = w.shape[0], w.shape[1]
    w_eff = np.transpose(w, (2, 3, 1, 0))    # (kh, kw, ci, co)
    sel = _tap_select("conv", k, s, p, Wi, Wo)
    q = np.einsum("aow,haic->hiwco", sel, w_eff)   # (kh, ci, wi, co, wo)
    return q.reshape(k * Ci * Wi, Co * Wo)


def _convt_q_stacked(w, k, s, p, Wi, Wo):
    """Stride-2 ConvTranspose2d: horizontal taps folded, tap-stacked along rows."""
    w = np.asarray(w, np.float32)            # (Ci, Co, kh, kw)
    Ci, Co = w.shape[0], w.shape[1]
    w_eff = np.transpose(w, (2, 3, 0, 1))    # (kh, kw, ci, co)
    sel = _tap_select("convT", k, s, p, Wi, Wo)
    q = np.einsum("aow,haic->hiwco", sel, w_eff)
    return q.reshape(k * Ci * Wi, Co * Wo)


def _convt_r_stacked(k, s, p, Hi, Ho, batch):
    """Vertical 0/1 scatter for ConvTranspose2d, all taps stacked along rows,
    block-diagonal over batch: (k*N*Ho, N*Hi)."""
    sel = _tap_select("convT", k, s, p, Hi, Ho)            # (k, Ho, Hi)
    eye = np.eye(batch, dtype=np.float32)
    R = np.einsum("nm,koi->knomi", eye, sel)               # (k, n, Ho, m, Hi)
    return R.reshape(k * batch * Ho, batch * Hi)


def _enc3_q(w):
    """7x7 valid conv to 1x1: single matmul weight, rows = kh*Ci*7 + ci*7 + kw."""
    w = np.asarray(w, np.float32)            # (Co, Ci, 7, 7)
    Co, Ci, K, _ = w.shape
    return np.transpose(w, (2, 1, 3, 0)).reshape(K * Ci * K, Co)


def _dec1_q(w):
    """7x7 convT from 1x1: single matmul weight, cols = ho*Co*7 + co*7 + wo."""
    w = np.asarray(w, np.float32)            # (Ci, Co, 7, 7)
    Ci, Co, K, _ = w.shape
    return np.transpose(w, (0, 2, 1, 3)).reshape(Ci, K * Co * K)


class _SlabPacker:
    """Packs many small weight blocks into one (rows, 128) slab with 8-aligned
    row offsets (one DMA instead of many)."""

    def __init__(self, width=128):
        self.width = width
        self.blocks = []
        self.offsets = {}
        self.row = 0

    def add(self, name, mat):
        mat = np.asarray(mat, np.float32)
        r, c = mat.shape
        assert c <= self.width, (name, mat.shape)
        rp = _round_up(r, 8)
        blk = np.zeros((rp, self.width), np.float32)
        blk[:r, :c] = mat
        self.blocks.append(blk)
        self.offsets[name] = self.row
        self.row += rp

    def finish(self):
        return np.concatenate(self.blocks, axis=0)


def pack_params(params, batch, height, width, channels):
    """One-time packing of torch-layout weights into 3 kernel operands."""
    c0, c1, c2 = channels
    assert height == width
    H = height
    H1 = (H + 2 * 1 - 3) // 2 + 1
    H2 = (H1 + 2 * 1 - 3) // 2 + 1
    assert H2 == 7, "the 7x7 bottleneck conv requires a 28x28 input"

    packer = _SlabPacker(width=128)
    packer.add("q_enc1", _conv_q_stacked(params["enc1_w"], 3, 2, 1, H, H1))
    packer.add("q_enc2", _conv_q_stacked(params["enc2_w"], 3, 2, 1, H1, H2))
    packer.add("q_enc3", _enc3_q(params["enc3_w"]))
    packer.add("r_dec2", _convt_r_stacked(3, 2, 1, H2, H1, batch))
    packer.add("q_dec2", _convt_q_stacked(params["dec2_w"], 3, 2, 1, H2, H1))
    packer.add("r_dec3", _convt_r_stacked(3, 2, 1, H1, H, batch))
    packer.add("q_dec3", _convt_q_stacked(params["dec3_w"], 3, 2, 1, H1, H))
    w_slab = jnp.asarray(packer.finish(), jnp.bfloat16)   # 0/1 R entries exact in bf16

    qd1 = jnp.asarray(_dec1_q(params["dec1_w"]), jnp.bfloat16)   # (c2, 7*c1*7)

    # Bias slab, one f32 row per layer (layout matches each layer's output lanes).
    b_rows = [
        np.repeat(np.asarray(params["enc1_b"], np.float32), H1),              # c0*W1
        np.repeat(np.asarray(params["enc2_b"], np.float32), H2),              # c1*W2
        np.asarray(params["enc3_b"], np.float32),                             # c2
        np.tile(np.repeat(np.asarray(params["dec1_b"], np.float32), H2), H2), # 7*c1*7
        np.repeat(np.asarray(params["dec2_b"], np.float32), H1),              # c0*W1
        np.repeat(np.asarray(params["dec3_b"], np.float32), H),               # 3*W
    ]
    bwidth = _round_up(max(len(r) for r in b_rows), 128)
    bias = np.zeros((8, bwidth), np.float32)
    for i, r in enumerate(b_rows):
        bias[i, : len(r)] = r
    bias_slab = jnp.asarray(bias)

    meta = dict(N=batch, Cin=3, H=H, W=H, channels=(c0, c1, c2),
                H1=H1, H2=H2, off=dict(packer.offsets))
    return (w_slab, qd1, bias_slab), meta


# ----------------------------------------------------------------------------
# Fused Pallas kernel: whole autoencoder forward
# ----------------------------------------------------------------------------
def _autoencoder_kernel(x_ref, w_ref, qd1_ref, b_ref, out_ref,
                        pad1_ref, pad2_ref, *, meta):
    f32, bf16 = jnp.float32, jnp.bfloat16
    N, Cin, H, W = meta["N"], meta["Cin"], meta["H"], meta["W"]
    c0, c1, c2 = meta["channels"]
    H1, H2 = meta["H1"], meta["H2"]
    off = meta["off"]

    # ---- stage 0: NCHW -> padded (row=(n,h), lane=(c,w)) layout for enc1 ------
    for n in range(N):
        base = n * (H + 1)
        pad1_ref[base:base + 1, :] = jnp.zeros((1, Cin * W), f32)   # zero guard row (pad=1)
        row_n = jnp.concatenate([x_ref[n, c, :, :] for c in range(Cin)], axis=1)
        pad1_ref[base + 1:base + 1 + H, :] = row_n

    # ---- enc1: 3x3 s2 p1 conv, Cin -> c0, ReLU --------------------------------
    # vertical taps via strided sublane loads, 3 horizontal taps fused in one matmul
    taps = []
    for kh in range(3):
        blocks = [pad1_ref[pl.ds(n * (H + 1) + kh, H1, stride=2), :] for n in range(N)]
        taps.append(jnp.concatenate(blocks, axis=0) if N > 1 else blocks[0])
    a = jnp.concatenate(taps, axis=1).astype(bf16)                   # (N*H1, 3*Cin*W)
    k1, n1 = 3 * Cin * W, c0 * H1
    y = jnp.dot(a, w_ref[off["q_enc1"]:off["q_enc1"] + k1, :n1],
                preferred_element_type=f32)
    y = jnp.maximum(y + b_ref[0:1, :n1], 0.0)                        # (N*H1, c0*W1)

    # ---- enc2: 3x3 s2 p1 conv, c0 -> c1, ReLU ---------------------------------
    for n in range(N):
        base = n * (H1 + 1)
        pad2_ref[base:base + 1, :] = jnp.zeros((1, c0 * H1), f32)
        pad2_ref[base + 1:base + 1 + H1, :] = y[n * H1:(n + 1) * H1, :]
    taps = []
    for kh in range(3):
        blocks = [pad2_ref[pl.ds(n * (H1 + 1) + kh, H2, stride=2), :] for n in range(N)]
        taps.append(jnp.concatenate(blocks, axis=0) if N > 1 else blocks[0])
    a = jnp.concatenate(taps, axis=1).astype(bf16)                   # (N*H2, 3*c0*W1)
    k2, n2 = 3 * c0 * H1, c1 * H2
    y = jnp.dot(a, w_ref[off["q_enc2"]:off["q_enc2"] + k2, :n2],
                preferred_element_type=f32)
    y = jnp.maximum(y + b_ref[1:2, :n2], 0.0)                        # (N*H2, c1*W2)

    # ---- enc3: 7x7 valid conv -> 1x1 bottleneck (single matmul) ---------------
    flat = jnp.concatenate(
        [jnp.concatenate([y[n * H2 + kh:n * H2 + kh + 1, :] for kh in range(H2)], axis=1)
         for n in range(N)], axis=0).astype(bf16)                    # (N, 7*c1*7)
    k3 = H2 * c1 * H2
    z = jnp.dot(flat, w_ref[off["q_enc3"]:off["q_enc3"] + k3, :c2],
                preferred_element_type=f32)
    z = z + b_ref[2:3, :c2]                                          # (N, c2), no activation

    # ---- dec1: 7x7 convT from 1x1 -> 7x7 (single matmul), ReLU ----------------
    d1w = H2 * c1 * H2
    d1 = jnp.dot(z.astype(bf16), qd1_ref[...], preferred_element_type=f32)   # (N, 392)
    d1 = jnp.maximum(d1 + b_ref[3:4, :d1w], 0.0)
    row_w = c1 * H2
    h3 = jnp.concatenate(
        [d1[n:n + 1, ho * row_w:(ho + 1) * row_w] for n in range(N) for ho in range(H2)],
        axis=0).astype(bf16)                                          # (N*H2, c1*W2)

    # ---- dec2: 3x3 s2 p1 op1 convT, c1 -> c0, ReLU ----------------------------
    # vertical scatter: one 0/1 R matmul (taps stacked along rows), then stacked-Q matmul
    nHo, nHi = N * H1, N * H2
    st = jnp.dot(w_ref[off["r_dec2"]:off["r_dec2"] + 3 * nHo, :nHi], h3,
                 preferred_element_type=f32)                          # (3*N*H1, c1*W2)
    a = jnp.concatenate([st[kh * nHo:(kh + 1) * nHo, :] for kh in range(3)],
                        axis=1).astype(bf16)                          # (N*H1, 3*c1*W2)
    kd2, nd2 = 3 * c1 * H2, c0 * H1
    y = jnp.dot(a, w_ref[off["q_dec2"]:off["q_dec2"] + kd2, :nd2],
                preferred_element_type=f32)
    y = jnp.maximum(y + b_ref[4:5, :nd2], 0.0)                        # (N*H1, c0*W1)

    # ---- dec3: 3x3 s2 p1 op1 convT, c0 -> 3, Sigmoid --------------------------
    nHo, nHi = N * H, N * H1
    st = jnp.dot(w_ref[off["r_dec3"]:off["r_dec3"] + 3 * nHo, :nHi], y.astype(bf16),
                 preferred_element_type=f32)                          # (3*N*H, c0*W1)
    a = jnp.concatenate([st[kh * nHo:(kh + 1) * nHo, :] for kh in range(3)],
                        axis=1).astype(bf16)                          # (N*H, 3*c0*W1)
    kd3, nd3 = 3 * c0 * H1, Cin * W
    y = jnp.dot(a, w_ref[off["q_dec3"]:off["q_dec3"] + kd3, :nd3],
                preferred_element_type=f32)
    y = y + b_ref[5:6, :nd3]
    y = pl.reciprocal(1.0 + jnp.exp(-y), approx=True)                 # sigmoid, f32 epilogue

    # ---- write NCHW output directly (no wrapper-side transpose) ---------------
    for n in range(N):
        for c in range(Cin):
            out_ref[n, c, :, :] = y[n * H:(n + 1) * H, c * W:(c + 1) * W]


def make_forward(meta):
    N, Cin, H, W = meta["N"], meta["Cin"], meta["H"], meta["W"]
    c0 = meta["channels"][0]
    H1 = meta["H1"]
    kern = functools.partial(_autoencoder_kernel, meta=meta)

    def forward(packed, x):
        w_slab, qd1, bias_slab = packed
        return pl.pallas_call(
            kern,
            out_shape=jax.ShapeDtypeStruct((N, Cin, H, W), jnp.float32),
            scratch_shapes=[
                pltpu.VMEM((N * (H + 1), Cin * W), jnp.float32),   # padded input  (enc1)
                pltpu.VMEM((N * (H1 + 1), c0 * H1), jnp.float32),  # padded enc1 out (enc2)
            ],
        )(x, w_slab, qd1, bias_slab)

    return forward


# ----------------------------------------------------------------------------
# Parameter init (PyTorch layouts / init ranges)
# ----------------------------------------------------------------------------
def init_params(key, channels=(4, 8, 16)):
    c0, c1, c2 = channels

    def uinit(key, shape, fan_in):
        bound = 1.0 / jnp.sqrt(float(fan_in))
        return jax.random.uniform(key, shape, jnp.float32, -bound, bound)

    keys = jax.random.split(key, 12)
    p = {}
    p["enc1_w"] = uinit(keys[0], (c0, 3, 3, 3), 3 * 9)
    p["enc1_b"] = uinit(keys[1], (c0,), 3 * 9)
    p["enc2_w"] = uinit(keys[2], (c1, c0, 3, 3), c0 * 9)
    p["enc2_b"] = uinit(keys[3], (c1,), c0 * 9)
    p["enc3_w"] = uinit(keys[4], (c2, c1, 7, 7), c1 * 49)
    p["enc3_b"] = uinit(keys[5], (c2,), c1 * 49)
    p["dec1_w"] = uinit(keys[6], (c2, c1, 7, 7), c1 * 49)
    p["dec1_b"] = uinit(keys[7], (c1,), c1 * 49)
    p["dec2_w"] = uinit(keys[8], (c1, c0, 3, 3), c0 * 9)
    p["dec2_b"] = uinit(keys[9], (c0,), c0 * 9)
    p["dec3_w"] = uinit(keys[10], (c0, 3, 3, 3), 3 * 9)
    p["dec3_b"] = uinit(keys[11], (3,), 3 * 9)
    return p


# ----------------------------------------------------------------------------
# Pure-XLA f32 reference (sanity check only)
# ----------------------------------------------------------------------------
def _ref_conv(x, w, b, stride, pad):
    y = jax.lax.conv_general_dilated(
        x, w, (stride, stride), [(pad, pad), (pad, pad)],
        dimension_numbers=("NCHW", "OIHW", "NCHW"))
    return y + b.reshape(1, -1, 1, 1)


def _ref_convT(x, w, b, stride, pad, out_pad):
    k = w.shape[2]
    lo = k - 1 - pad
    hi = k - 1 - pad + out_pad
    w_eff = jnp.flip(w, axis=(2, 3)).transpose(1, 0, 2, 3)
    y = jax.lax.conv_general_dilated(
        x, w_eff, (1, 1), [(lo, hi), (lo, hi)],
        lhs_dilation=(stride, stride),
        dimension_numbers=("NCHW", "OIHW", "NCHW"))
    return y + b.reshape(1, -1, 1, 1)


def reference_forward(p, x):
    h = jax.nn.relu(_ref_conv(x, p["enc1_w"], p["enc1_b"], 2, 1))
    h = jax.nn.relu(_ref_conv(h, p["enc2_w"], p["enc2_b"], 2, 1))
    h = _ref_conv(h, p["enc3_w"], p["enc3_b"], 1, 0)
    h = jax.nn.relu(_ref_convT(h, p["dec1_w"], p["dec1_b"], 1, 0, 0))
    h = jax.nn.relu(_ref_convT(h, p["dec2_w"], p["dec2_b"], 2, 1, 1))
    h = jax.nn.sigmoid(_ref_convT(h, p["dec3_w"], p["dec3_b"], 2, 1, 1))
    return h


# ----------------------------------------------------------------------------
if __name__ == "__main__":
    key = jax.random.PRNGKey(0)
    k_x, k_p = jax.random.split(key)

    channels = (4, 8, 16)
    # 28x28 so the k=7 bottleneck conv yields 1x1 (28 -> 14 -> 7 -> 1).
    x = jax.random.uniform(k_x, (2, 3, 28, 28), jnp.float32)
    params = init_params(k_p, channels)

    # One-time weight packing (hoisted out of the per-call forward).
    packed, meta = pack_params(params, batch=2, height=28, width=28, channels=channels)

    fwd = jax.jit(make_forward(meta))
    out = jax.block_until_ready(fwd(packed, x))

    assert out.shape == (2, 3, 28, 28), out.shape
    assert out.dtype == jnp.float32

    # Sanity check vs a pure-XLA f32 reference (bf16 MXU inputs -> loose tol).
    ref = jax.block_until_ready(reference_forward(params, x))
    max_err = float(jnp.max(jnp.abs(out - ref)))
    assert max_err < 5e-2, f"mismatch vs reference: max_err={max_err}"

    print("KERNEL_OK")
</pallas_src>

<mosaic_0001>
module attributes {stable_mosaic.version = 11 : i64} {
  func.func @_autoencoder_kernel(%arg0: memref<2x3x28x28xf32, #tpu.memory_space<vmem>>, %arg1: memref<1408x128xbf16, #tpu.memory_space<vmem>>, %arg2: memref<16x392xbf16, #tpu.memory_space<vmem>>, %arg3: memref<8x512xf32, #tpu.memory_space<vmem>>, %arg4: memref<2x3x28x28xf32, #tpu.memory_space<vmem>>, %arg5: memref<58x84xf32, #tpu.memory_space<vmem>>, %arg6: memref<30x56xf32, #tpu.memory_space<vmem>>) attributes {dimension_semantics = [], scalar_prefetch = 0 : i64, scratch_operands = 2 : i64, tpu.core_type = #tpu.core_type<tc>} {
    %cst = arith.constant 0.000000e+00 : f32
    %0 = vector.broadcast %cst : f32 to vector<1x84xf32>
    %c0 = arith.constant 0 : index
    %c0_0 = arith.constant 0 : index
    %1 = vector.load %arg5[%c0, %c0_0] : memref<58x84xf32, #tpu.memory_space<vmem>>, vector<1x84xf32>
    tpu.vector_store %arg5[%c0, %c0_0], %0 {strides = array<i32>} : memref<58x84xf32, #tpu.memory_space<vmem>>, vector<1x84xf32>,
    %c0_1 = arith.constant 0 : index
    %c0_2 = arith.constant 0 : index
    %c0_3 = arith.constant 0 : index
    %c0_4 = arith.constant 0 : index
    %2 = vector.load %arg0[%c0_1, %c0_2, %c0_3, %c0_4] : memref<2x3x28x28xf32, #tpu.memory_space<vmem>>, vector<1x1x28x28xf32>
    %3 = vector.shape_cast %2 : vector<1x1x28x28xf32> to vector<28x28xf32>
    %c0_5 = arith.constant 0 : index
    %c1 = arith.constant 1 : index
    %c0_6 = arith.constant 0 : index
    %c0_7 = arith.constant 0 : index
    %4 = vector.load %arg0[%c0_5, %c1, %c0_6, %c0_7] : memref<2x3x28x28xf32, #tpu.memory_space<vmem>>, vector<1x1x28x28xf32>
    %5 = vector.shape_cast %4 : vector<1x1x28x28xf32> to vector<28x28xf32>
    %c0_8 = arith.constant 0 : index
    %c2 = arith.constant 2 : index
    %c0_9 = arith.constant 0 : index
    %c0_10 = arith.constant 0 : index
    %6 = vector.load %arg0[%c0_8, %c2, %c0_9, %c0_10] : memref<2x3x28x28xf32, #tpu.memory_space<vmem>>, vector<1x1x28x28xf32>
    %7 = vector.shape_cast %6 : vector<1x1x28x28xf32> to vector<28x28xf32>
    %8 = tpu.concatenate %3, %5, %7 in 1 : vector<28x28xf32>, vector<28x28xf32>, vector<28x28xf32> -> vector<28x84xf32>
    %c1_11 = arith.constant 1 : index
    %c0_12 = arith.constant 0 : index
    %9 = vector.load %arg5[%c1_11, %c0_12] : memref<58x84xf32, #tpu.memory_space<vmem>>, vector<28x84xf32>
    tpu.vector_store %arg5[%c1_11, %c0_12], %8 {strides = array<i32>} : memref<58x84xf32, #tpu.memory_space<vmem>>, vector<28x84xf32>,
    %cst_13 = arith.constant 0.000000e+00 : f32
    %10 = vector.broadcast %cst_13 : f32 to vector<1x84xf32>
    %c29 = arith.constant 29 : index
    %c0_14 = arith.constant 0 : index
    %11 = vector.load %arg5[%c29, %c0_14] : memref<58x84xf32, #tpu.memory_space<vmem>>, vector<1x84xf32>
    tpu.vector_store %arg5[%c29, %c0_14], %10 {strides = array<i32>} : memref<58x84xf32, #tpu.memory_space<vmem>>, vector<1x84xf32>,
    %c1_15 = arith.constant 1 : index
    %c0_16 = arith.constant 0 : index
    %c0_17 = arith.constant 0 : index
    %c0_18 = arith.constant 0 : index
    %12 = vector.load %arg0[%c1_15, %c0_16, %c0_17, %c0_18] : memref<2x3x28x28xf32, #tpu.memory_space<vmem>>, vector<1x1x28x28xf32>
    %13 = vector.shape_cast %12 : vector<1x1x28x28xf32> to vector<28x28xf32>
    %c1_19 = arith.constant 1 : index
    %c1_20 = arith.constant 1 : index
    %c0_21 = arith.constant 0 : index
    %c0_22 = arith.constant 0 : index
    %14 = vector.load %arg0[%c1_19, %c1_20, %c0_21, %c0_22] : memref<2x3x28x28xf32, #tpu.memory_space<vmem>>, vector<1x1x28x28xf32>
    %15 = vector.shape_cast %14 : vector<1x1x28x28xf32> to vector<28x28xf32>
    %c1_23 = arith.constant 1 : index
    %c2_24 = arith.constant 2 : index
    %c0_25 = arith.constant 0 : index
    %c0_26 = arith.constant 0 : index
    %16 = vector.load %arg0[%c1_23, %c2_24, %c0_25, %c0_26] : memref<2x3x28x28xf32, #tpu.memory_space<vmem>>, vector<1x1x28x28xf32>
    %17 = vector.shape_cast %16 : vector<1x1x28x28xf32> to vector<28x28xf32>
    %18 = tpu.concatenate %13, %15, %17 in 1 : vector<28x28xf32>, vector<28x28xf32>, vector<28x28xf32> -> vector<28x84xf32>
    %c30 = arith.constant 30 : index
    %c0_27 = arith.constant 0 : index
    %19 = vector.load %arg5[%c30, %c0_27] : memref<58x84xf32, #tpu.memory_space<vmem>>, vector<28x84xf32>
    tpu.vector_store %arg5[%c30, %c0_27], %18 {strides = array<i32>} : memref<58x84xf32, #tpu.memory_space<vmem>>, vector<28x84xf32>,
    %c0_28 = arith.constant 0 : index
    %c0_29 = arith.constant 0 : index
    %20 = tpu.strided_load %arg5[%c0_28, %c0_29] {strides = array<i32: 2, 1>} : memref<58x84xf32, #tpu.memory_space<vmem>>, vector<14x84xf32>
    %c29_30 = arith.constant 29 : index
    %c0_31 = arith.constant 0 : index
    %21 = tpu.strided_load %arg5[%c29_30, %c0_31] {strides = array<i32: 2, 1>} : memref<58x84xf32, #tpu.memory_space<vmem>>, vector<14x84xf32>
    %22 = tpu.concatenate %20, %21 in 0 : vector<14x84xf32>, vector<14x84xf32> -> vector<28x84xf32>
    %c1_32 = arith.constant 1 : index
    %c0_33 = arith.constant 0 : index
    %23 = tpu.strided_load %arg5[%c1_32, %c0_33] {strides = array<i32: 2, 1>} : memref<58x84xf32, #tpu.memory_space<vmem>>, vector<14x84xf32>
    %c30_34 = arith.constant 30 : index
    %c0_35 = arith.constant 0 : index
    %24 = tpu.strided_load %arg5[%c30_34, %c0_35] {strides = array<i32: 2, 1>} : memref<58x84xf32, #tpu.memory_space<vmem>>, vector<14x84xf32>
    %25 = tpu.concatenate %23, %24 in 0 : vector<14x84xf32>, vector<14x84xf32> -> vector<28x84xf32>
    %c2_36 = arith.constant 2 : index
    %c0_37 = arith.constant 0 : index
    %26 = tpu.strided_load %arg5[%c2_36, %c0_37] {strides = array<i32: 2, 1>} : memref<58x84xf32, #tpu.memory_space<vmem>>, vector<14x84xf32>
    %c31 = arith.constant 31 : index
    %c0_38 = arith.constant 0 : index
    %27 = tpu.strided_load %arg5[%c31, %c0_38] {strides = array<i32: 2, 1>} : memref<58x84xf32, #tpu.memory_space<vmem>>, vector<14x84xf32>
    %28 = tpu.concatenate %26, %27 in 0 : vector<14x84xf32>, vector<14x84xf32> -> vector<28x84xf32>
    %29 = tpu.concatenate %22, %25, %28 in 1 : vector<28x84xf32>, vector<28x84xf32>, vector<28x84xf32> -> vector<28x252xf32>
    %30 = arith.truncf %29 : vector<28x252xf32> to vector<28x252xbf16>
    %c0_39 = arith.constant 0 : index
    %c0_40 = arith.constant 0 : index
    %31 = vector.load %arg1[%c0_39, %c0_40] : memref<1408x128xbf16, #tpu.memory_space<vmem>>, vector<252x56xbf16>
    %cst_41 = arith.constant dense<0.000000e+00> : vector<28x56xf32>
    %32 = tpu.matmul %30, %31, %cst_41 {dimension_numbers = #tpu.dot_dimension_numbers<[1], [0], [0], [1], [0, 0, 1, 1], [], []>} : vector<28x252xbf16>, vector<252x56xbf16>, vector<28x56xf32> -> vector<28x56xf32>
    %c0_42 = arith.constant 0 : index
    %c0_43 = arith.constant 0 : index
    %33 = vector.load %arg3[%c0_42, %c0_43] : memref<8x512xf32, #tpu.memory_space<vmem>>, vector<1x56xf32>
    %34 = vector.broadcast %33 : vector<1x56xf32> to vector<28x56xf32>
    %35 = arith.addf %32, %34 : vector<28x56xf32>
    %cst_44 = arith.constant 0.000000e+00 : f32
    %36 = vector.broadcast %cst_44 : f32 to vector<28x56xf32>
    %37 = arith.maximumf %35, %36 : vector<28x56xf32>
    %cst_45 = arith.constant 0.000000e+00 : f32
    %38 = vector.broadcast %cst_45 : f32 to vector<1x56xf32>
    %c0_46 = arith.constant 0 : index
    %c0_47 = arith.constant 0 : index
    %39 = vector.load %arg6[%c0_46, %c0_47] : memref<30x56xf32, #tpu.memory_space<vmem>>, vector<1x56xf32>
    tpu.vector_store %arg6[%c0_46, %c0_47], %38 {strides = array<i32>} : memref<30x56xf32, #tpu.memory_space<vmem>>, vector<1x56xf32>,
    %40 = vector.extract_strided_slice %37 {offsets = [0, 0], sizes = [14, 56], strides = [1, 1]} : vector<28x56xf32> to vector<14x56xf32>
    %c1_48 = arith.constant 1 : index
    %c0_49 = arith.constant 0 : index
    %41 = vector.load %arg6[%c1_48, %c0_49] : memref<30x56xf32, #tpu.memory_space<vmem>>, vector<14x56xf32>
    tpu.vector_store %arg6[%c1_48, %c0_49], %40 {strides = array<i32>} : memref<30x56xf32, #tpu.memory_space<vmem>>, vector<14x56xf32>,
    %cst_50 = arith.constant 0.000000e+00 : f32
    %42 = vector.broadcast %cst_50 : f32 to vector<1x56xf32>
    %c15 = arith.constant 15 : index
    %c0_51 = arith.constant 0 : index
    %43 = vector.load %arg6[%c15, %c0_51] : memref<30x56xf32, #tpu.memory_space<vmem>>, vector<1x56xf32>
    tpu.vector_store %arg6[%c15, %c0_51], %42 {strides = array<i32>} : memref<30x56xf32, #tpu.memory_space<vmem>>, vector<1x56xf32>,
    %44 = vector.extract_strided_slice %37 {offsets = [14, 0], sizes = [14, 56], strides = [1, 1]} : vector<28x56xf32> to vector<14x56xf32>
    %c16 = arith.constant 16 : index
    %c0_52 = arith.constant 0 : index
    %45 = vector.load %arg6[%c16, %c0_52] : memref<30x56xf32, #tpu.memory_space<vmem>>, vector<14x56xf32>
    tpu.vector_store %arg6[%c16, %c0_52], %44 {strides = array<i32>} : memref<30x56xf32, #tpu.memory_space<vmem>>, vector<14x56xf32>,
    %c0_53 = arith.constant 0 : index
    %c0_54 = arith.constant 0 : index
    %46 = tpu.strided_load %arg6[%c0_53, %c0_54] {strides = array<i32: 2, 1>} : memref<30x56xf32, #tpu.memory_space<vmem>>, vector<7x56xf32>
    %c15_55 = arith.constant 15 : index
    %c0_56 = arith.constant 0 : index
    %47 = tpu.strided_load %arg6[%c15_55, %c0_56] {strides = array<i32: 2, 1>} : memref<30x56xf32, #tpu.memory_space<vmem>>, vector<7x56xf32>
    %48 = tpu.concatenate %46, %47 in 0 : vector<7x56xf32>, vector<7x56xf32> -> vector<14x56xf32>
    %c1_57 = arith.constant 1 : index
    %c0_58 = arith.constant 0 : index
    %49 = tpu.strided_load %arg6[%c1_57, %c0_58] {strides = array<i32: 2, 1>} : memref<30x56xf32, #tpu.memory_space<vmem>>, vector<7x56xf32>
    %c16_59 = arith.constant 16 : index
    %c0_60 = arith.constant 0 : index
    %50 = tpu.strided_load %arg6[%c16_59, %c0_60] {strides = array<i32: 2, 1>} : memref<30x56xf32, #tpu.memory_space<vmem>>, vector<7x56xf32>
    %51 = tpu.concatenate %49, %50 in 0 : vector<7x56xf32>, vector<7x56xf32> -> vector<14x56xf32>
    %c2_61 = arith.constant 2 : index
    %c0_62 = arith.constant 0 : index
    %52 = tpu.strided_load %arg6[%c2_61, %c0_62] {strides = array<i32: 2, 1>} : memref<30x56xf32, #tpu.memory_space<vmem>>, vector<7x56xf32>
    %c17 = arith.constant 17 : index
    %c0_63 = arith.constant 0 : index
    %53 = tpu.strided_load %arg6[%c17, %c0_63] {strides = array<i32: 2, 1>} : memref<30x56xf32, #tpu.memory_space<vmem>>, vector<7x56xf32>
    %54 = tpu.concatenate %52, %53 in 0 : vector<7x56xf32>, vector<7x56xf32> -> vector<14x56xf32>
    %55 = tpu.concatenate %48, %51, %54 in 1 : vector<14x56xf32>, vector<14x56xf32>, vector<14x56xf32> -> vector<14x168xf32>
    %56 = arith.truncf %55 : vector<14x168xf32> to vector<14x168xbf16>
    %c256 = arith.constant 256 : index
    %c0_64 = arith.constant 0 : index
    %57 = vector.load %arg1[%c256, %c0_64] : memref<1408x128xbf16, #tpu.memory_space<vmem>>, vector<168x56xbf16>
    %cst_65 = arith.constant dense<0.000000e+00> : vector<14x56xf32>
    %58 = tpu.matmul %56, %57, %cst_65 {dimension_numbers = #tpu.dot_dimension_numbers<[1], [0], [0], [1], [0, 0, 1, 1], [], []>} : vector<14x168xbf16>, vector<168x56xbf16>, vector<14x56xf32> -> vector<14x56xf32>
    %c1_66 = arith.constant 1 : index
    %c0_67 = arith.constant 0 : index
    %59 = vector.load %arg3[%c1_66, %c0_67] : memref<8x512xf32, #tpu.memory_space<vmem>>, vector<1x56xf32>
    %60 = vector.broadcast %59 : vector<1x56xf32> to vector<14x56xf32>
    %61 = arith.addf %58, %60 : vector<14x56xf32>
    %cst_68 = arith.constant 0.000000e+00 : f32
    %62 = vector.broadcast %cst_68 : f32 to vector<14x56xf32>
    %63 = arith.maximumf %61, %62 : vector<14x56xf32>
    %64 = vector.extract_strided_slice %63 {offsets = [0, 0], sizes = [1, 56], strides = [1, 1]} : vector<14x56xf32> to vector<1x56xf32>
    %65 = vector.extract_strided_slice %63 {offsets = [1, 0], sizes = [1, 56], strides = [1, 1]} : vector<14x56xf32> to vector<1x56xf32>
    %66 = vector.extract_strided_slice %63 {offsets = [2, 0], sizes = [1, 56], strides = [1, 1]} : vector<14x56xf32> to vector<1x56xf32>
    %67 = vector.extract_strided_slice %63 {offsets = [3, 0], sizes = [1, 56], strides = [1, 1]} : vector<14x56xf32> to vector<1x56xf32>
    %68 = vector.extract_strided_slice %63 {offsets = [4, 0], sizes = [1, 56], strides = [1, 1]} : vector<14x56xf32> to vector<1x56xf32>
    %69 = vector.extract_strided_slice %63 {offsets = [5, 0], sizes = [1, 56], strides = [1, 1]} : vector<14x56xf32> to vector<1x56xf32>
    %70 = vector.extract_strided_slice %63 {offsets = [6, 0], sizes = [1, 56], strides = [1, 1]} : vector<14x56xf32> to vector<1x56xf32>
    %71 = tpu.concatenate %64, %65, %66, %67, %68, %69, %70 in 1 : vector<1x56xf32>, vector<1x56xf32>, vector<1x56xf32>, vector<1x56xf32>, vector<1x56xf32>, vector<1x56xf32>, vector<1x56xf32> -> vector<1x392xf32>
    %72 = vector.extract_strided_slice %63 {offsets = [7, 0], sizes = [1, 56], strides = [1, 1]} : vector<14x56xf32> to vector<1x56xf32>
    %73 = vector.extract_strided_slice %63 {offsets = [8, 0], sizes = [1, 56], strides = [1, 1]} : vector<14x56xf32> to vector<1x56xf32>
    %74 = vector.extract_strided_slice %63 {offsets = [9, 0], sizes = [1, 56], strides = [1, 1]} : vector<14x56xf32> to vector<1x56xf32>
    %75 = vector.extract_strided_slice %63 {offsets = [10, 0], sizes = [1, 56], strides = [1, 1]} : vector<14x56xf32> to vector<1x56xf32>
    %76 = vector.extract_strided_slice %63 {offsets = [11, 0], sizes = [1, 56], strides = [1, 1]} : vector<14x56xf32> to vector<1x56xf32>
    %77 = vector.extract_strided_slice %63 {offsets = [12, 0], sizes = [1, 56], strides = [1, 1]} : vector<14x56xf32> to vector<1x56xf32>
    %78 = vector.extract_strided_slice %63 {offsets = [13, 0], sizes = [1, 56], strides = [1, 1]} : vector<14x56xf32> to vector<1x56xf32>
    %79 = tpu.concatenate %72, %73, %74, %75, %76, %77, %78 in 1 : vector<1x56xf32>, vector<1x56xf32>, vector<1x56xf32>, vector<1x56xf32>, vector<1x56xf32>, vector<1x56xf32>, vector<1x56xf32> -> vector<1x392xf32>
    %80 = tpu.concatenate %71, %79 in 0 : vector<1x392xf32>, vector<1x392xf32> -> vector<2x392xf32>
    %81 = arith.truncf %80 : vector<2x392xf32> to vector<2x392xbf16>
    %c424 = arith.constant 424 : index
    %c0_69 = arith.constant 0 : index
    %82 = vector.load %arg1[%c424, %c0_69] : memref<1408x128xbf16, #tpu.memory_space<vmem>>, vector<392x16xbf16>
    %cst_70 = arith.constant dense<0.000000e+00> : vector<2x16xf32>
    %83 = tpu.matmul %81, %82, %cst_70 {dimension_numbers = #tpu.dot_dimension_numbers<[1], [0], [0], [1], [0, 0, 1, 1], [], []>} : vector<2x392xbf16>, vector<392x16xbf16>, vector<2x16xf32> -> vector<2x16xf32>
    %c2_71 = arith.constant 2 : index
    %c0_72 = arith.constant 0 : index
    %84 = vector.load %arg3[%c2_71, %c0_72] : memref<8x512xf32, #tpu.memory_space<vmem>>, vector<1x16xf32>
    %85 = vector.broadcast %84 : vector<1x16xf32> to vector<2x16xf32>
    %86 = arith.addf %83, %85 : vector<2x16xf32>
    %87 = arith.truncf %86 : vector<2x16xf32> to vector<2x16xbf16>
    %c0_73 = arith.constant 0 : index
    %c0_74 = arith.constant 0 : index
    %88 = vector.load %arg2[%c0_73, %c0_74] : memref<16x392xbf16, #tpu.memory_space<vmem>>, vector<16x392xbf16>
    %cst_75 = arith.constant dense<0.000000e+00> : vector<2x392xf32>
    %89 = tpu.matmul %87, %88, %cst_75 {dimension_numbers = #tpu.dot_dimension_numbers<[1], [0], [0], [1], [0, 0, 1, 1], [], []>} : vector<2x16xbf16>, vector<16x392xbf16>, vector<2x392xf32> -> vector<2x392xf32>
    %c3 = arith.constant 3 : index
    %c0_76 = arith.constant 0 : index
    %90 = vector.load %arg3[%c3, %c0_76] : memref<8x512xf32, #tpu.memory_space<vmem>>, vector<1x392xf32>
    %91 = vector.broadcast %90 : vector<1x392xf32> to vector<2x392xf32>
    %92 = arith.addf %89, %91 : vector<2x392xf32>
    %cst_77 = arith.constant 0.000000e+00 : f32
    %93 = vector.broadcast %cst_77 : f32 to vector<2x392xf32>
    %94 = arith.maximumf %92, %93 : vector<2x392xf32>
    %95 = vector.extract_strided_slice %94 {offsets = [0, 0], sizes = [1, 56], strides = [1, 1]} : vector<2x392xf32> to vector<1x56xf32>
    %96 = vector.extract_strided_slice %94 {offsets = [0, 56], sizes = [1, 56], strides = [1, 1]} : vector<2x392xf32> to vector<1x56xf32>
    %97 = vector.extract_strided_slice %94 {offsets = [0, 112], sizes = [1, 56], strides = [1, 1]} : vector<2x392xf32> to vector<1x56xf32>
    %98 = vector.extract_strided_slice %94 {offsets = [0, 168], sizes = [1, 56], strides = [1, 1]} : vector<2x392xf32> to vector<1x56xf32>
    %99 = vector.extract_strided_slice %94 {offsets = [0, 224], sizes = [1, 56], strides = [1, 1]} : vector<2x392xf32> to vector<1x56xf32>
    %100 = vector.extract_strided_slice %94 {offsets = [0, 280], sizes = [1, 56], strides = [1, 1]} : vector<2x392xf32> to vector<1x56xf32>
    %101 = vector.extract_strided_slice %94 {offsets = [0, 336], sizes = [1, 56], strides = [1, 1]} : vector<2x392xf32> to vector<1x56xf32>
    %102 = vector.extract_strided_slice %94 {offsets = [1, 0], sizes = [1, 56], strides = [1, 1]} : vector<2x392xf32> to vector<1x56xf32>
    %103 = vector.extract_strided_slice %94 {offsets = [1, 56], sizes = [1, 56], strides = [1, 1]} : vector<2x392xf32> to vector<1x56xf32>
    %104 = vector.extract_strided_slice %94 {offsets = [1, 112], sizes = [1, 56], strides = [1, 1]} : vector<2x392xf32> to vector<1x56xf32>
    %105 = vector.extract_strided_slice %94 {offsets = [1, 168], sizes = [1, 56], strides = [1, 1]} : vector<2x392xf32> to vector<1x56xf32>
    %106 = vector.extract_strided_slice %94 {offsets = [1, 224], sizes = [1, 56], strides = [1, 1]} : vector<2x392xf32> to vector<1x56xf32>
    %107 = vector.extract_strided_slice %94 {offsets = [1, 280], sizes = [1, 56], strides = [1, 1]} : vector<2x392xf32> to vector<1x56xf32>
    %108 = vector.extract_strided_slice %94 {offsets = [1, 336], sizes = [1, 56], strides = [1, 1]} : vector<2x392xf32> to vector<1x56xf32>
    %109 = tpu.concatenate %95, %96, %97, %98, %99, %100, %101, %102, %103, %104, %105, %106, %107, %108 in 0 : vector<1x56xf32>, vector<1x56xf32>, vector<1x56xf32>, vector<1x56xf32>, vector<1x56xf32>, vector<1x56xf32>, vector<1x56xf32>, vector<1x56xf32>, vector<1x56xf32>, vector<1x56xf32>, vector<1x56xf32>, vector<1x56xf32>, vector<1x56xf32>, vector<1x56xf32> -> vector<14x56xf32>
    %110 = arith.truncf %109 : vector<14x56xf32> to vector<14x56xbf16>
    %c816 = arith.constant 816 : index
    %c0_78 = arith.constant 0 : index
    %111 = vector.load %arg1[%c816, %c0_78] : memref<1408x128xbf16, #tpu.memory_space<vmem>>, vector<84x14xbf16>
    %cst_79 = arith.constant dense<0.000000e+00> : vector<84x56xf32>
    %112 = tpu.matmul %111, %110, %cst_79 {dimension_numbers = #tpu.dot_dimension_numbers<[1], [0], [0], [1], [0, 0, 1, 1], [], []>} : vector<84x14xbf16>, vector<14x56xbf16>, vector<84x56xf32> -> vector<84x56xf32>
    %113 = vector.extract_strided_slice %112 {offsets = [0, 0], sizes = [28, 56], strides = [1, 1]} : vector<84x56xf32> to vector<28x56xf32>
    %114 = vector.extract_strided_slice %112 {offsets = [28, 0], sizes = [28, 56], strides = [1, 1]} : vector<84x56xf32> to vector<28x56xf32>
    %115 = vector.extract_strided_slice %112 {offsets = [56, 0], sizes = [28, 56], strides = [1, 1]} : vector<84x56xf32> to vector<28x56xf32>
    %116 = tpu.concatenate %113, %114, %115 in 1 : vector<28x56xf32>, vector<28x56xf32>, vector<28x56xf32> -> vector<28x168xf32>
    %117 = arith.truncf %116 : vector<28x168xf32> to vector<28x168xbf16>
    %c904 = arith.constant 904 : index
    %c0_80 = arith.constant 0 : index
    %118 = vector.load %arg1[%c904, %c0_80] : memref<1408x128xbf16, #tpu.memory_space<vmem>>, vector<168x56xbf16>
    %cst_81 = arith.constant dense<0.000000e+00> : vector<28x56xf32>
    %119 = tpu.matmul %117, %118, %cst_81 {dimension_numbers = #tpu.dot_dimension_numbers<[1], [0], [0], [1], [0, 0, 1, 1], [], []>} : vector<28x168xbf16>, vector<168x56xbf16>, vector<28x56xf32> -> vector<28x56xf32>
    %c4 = arith.constant 4 : index
    %c0_82 = arith.constant 0 : index
    %120 = vector.load %arg3[%c4, %c0_82] : memref<8x512xf32, #tpu.memory_space<vmem>>, vector<1x56xf32>
    %121 = vector.broadcast %120 : vector<1x56xf32> to vector<28x56xf32>
    %122 = arith.addf %119, %121 : vector<28x56xf32>
    %cst_83 = arith.constant 0.000000e+00 : f32
    %123 = vector.broadcast %cst_83 : f32 to vector<28x56xf32>
    %124 = arith.maximumf %122, %123 : vector<28x56xf32>
    %c1072 = arith.constant 1072 : index
    %c0_84 = arith.constant 0 : index
    %125 = vector.load %arg1[%c1072, %c0_84] : memref<1408x128xbf16, #tpu.memory_space<vmem>>, vector<168x28xbf16>
    %126 = arith.truncf %124 : vector<28x56xf32> to vector<28x56xbf16>
    %cst_85 = arith.constant dense<0.000000e+00> : vector<168x56xf32>
    %127 = tpu.matmul %125, %126, %cst_85 {dimension_numbers = #tpu.dot_dimension_numbers<[1], [0], [0], [1], [0, 0, 1, 1], [], []>} : vector<168x28xbf16>, vector<28x56xbf16>, vector<168x56xf32> -> vector<168x56xf32>
    %128 = vector.extract_strided_slice %127 {offsets = [0, 0], sizes = [56, 56], strides = [1, 1]} : vector<168x56xf32> to vector<56x56xf32>
    %129 = vector.extract_strided_slice %127 {offsets = [56, 0], sizes = [56, 56], strides = [1, 1]} : vector<168x56xf32> to vector<56x56xf32>
    %130 = vector.extract_strided_slice %127 {offsets = [112, 0], sizes = [56, 56], strides = [1, 1]} : vector<168x56xf32> to vector<56x56xf32>
    %131 = tpu.concatenate %128, %129, %130 in 1 : vector<56x56xf32>, vector<56x56xf32>, vector<56x56xf32> -> vector<56x168xf32>
    %132 = arith.truncf %131 : vector<56x168xf32> to vector<56x168xbf16>
    %c1240 = arith.constant 1240 : index
    %c0_86 = arith.constant 0 : index
    %133 = vector.load %arg1[%c1240, %c0_86] : memref<1408x128xbf16, #tpu.memory_space<vmem>>, vector<168x84xbf16>
    %cst_87 = arith.constant dense<0.000000e+00> : vector<56x84xf32>
    %134 = tpu.matmul %132, %133, %cst_87 {dimension_numbers = #tpu.dot_dimension_numbers<[1], [0], [0], [1], [0, 0, 1, 1], [], []>} : vector<56x168xbf16>, vector<168x84xbf16>, vector<56x84xf32> -> vector<56x84xf32>
    %c5 = arith.constant 5 : index
    %c0_88 = arith.constant 0 : index
    %135 = vector.load %arg3[%c5, %c0_88] : memref<8x512xf32, #tpu.memory_space<vmem>>, vector<1x84xf32>
    %136 = vector.broadcast %135 : vector<1x84xf32> to vector<56x84xf32>
    %137 = arith.addf %134, %136 : vector<56x84xf32>
    %cst_89 = arith.constant 0.000000e+00 : f32
    %138 = vector.broadcast %cst_89 : f32 to vector<56x84xf32>
    %139 = arith.subf %138, %137 : vector<56x84xf32>
    %140 = math.exp %139 : vector<56x84xf32>
    %cst_90 = arith.constant 1.000000e+00 : f32
    %141 = vector.broadcast %cst_90 : f32 to vector<56x84xf32>
    %142 = arith.addf %141, %140 : vector<56x84xf32>
    %143 = tpu.reciprocal %142 {approx = true} : vector<56x84xf32> -> vector<56x84xf32>
    %144 = vector.extract_strided_slice %143 {offsets = [0, 0], sizes = [28, 28], strides = [1, 1]} : vector<56x84xf32> to vector<28x28xf32>
    %c0_91 = arith.constant 0 : index
    %c0_92 = arith.constant 0 : index
    %c0_93 = arith.constant 0 : index
    %c0_94 = arith.constant 0 : index
    %145 = vector.load %arg4[%c0_91, %c0_92, %c0_93, %c0_94] : memref<2x3x28x28xf32, #tpu.memory_space<vmem>>, vector<1x1x28x28xf32>
    %146 = vector.shape_cast %145 : vector<1x1x28x28xf32> to vector<28x28xf32>
    %147 = vector.shape_cast %144 : vector<28x28xf32> to vector<1x1x28x28xf32>
    tpu.vector_store %arg4[%c0_91, %c0_92, %c0_93, %c0_94], %147 {strides = array<i32>} : memref<2x3x28x28xf32, #tpu.memory_space<vmem>>, vector<1x1x28x28xf32>,
    %148 = vector.extract_strided_slice %143 {offsets = [0, 28], sizes = [28, 28], strides = [1, 1]} : vector<56x84xf32> to vector<28x28xf32>
    %c0_95 = arith.constant 0 : index
    %c1_96 = arith.constant 1 : index
    %c0_97 = arith.constant 0 : index
    %c0_98 = arith.constant 0 : index
    %149 = vector.load %arg4[%c0_95, %c1_96, %c0_97, %c0_98] : memref<2x3x28x28xf32, #tpu.memory_space<vmem>>, vector<1x1x28x28xf32>
    %150 = vector.shape_cast %149 : vector<1x1x28x28xf32> to vector<28x28xf32>
    %151 = vector.shape_cast %148 : vector<28x28xf32> to vector<1x1x28x28xf32>
    tpu.vector_store %arg4[%c0_95, %c1_96, %c0_97, %c0_98], %151 {strides = array<i32>} : memref<2x3x28x28xf32, #tpu.memory_space<vmem>>, vector<1x1x28x28xf32>,
    %152 = vector.extract_strided_slice %143 {offsets = [0, 56], sizes = [28, 28], strides = [1, 1]} : vector<56x84xf32> to vector<28x28xf32>
    %c0_99 = arith.constant 0 : index
    %c2_100 = arith.constant 2 : index
    %c0_101 = arith.constant 0 : index
    %c0_102 = arith.constant 0 : index
    %153 = vector.load %arg4[%c0_99, %c2_100, %c0_101, %c0_102] : memref<2x3x28x28xf32, #tpu.memory_space<vmem>>, vector<1x1x28x28xf32>
    %154 = vector.shape_cast %153 : vector<1x1x28x28xf32> to vector<28x28xf32>
    %155 = vector.shape_cast %152 : vector<28x28xf32> to vector<1x1x28x28xf32>
    tpu.vector_store %arg4[%c0_99, %c2_100, %c0_101, %c0_102], %155 {strides = array<i32>} : memref<2x3x28x28xf32, #tpu.memory_space<vmem>>, vector<1x1x28x28xf32>,
    %156 = vector.extract_strided_slice %143 {offsets = [28, 0], sizes = [28, 28], strides = [1, 1]} : vector<56x84xf32> to vector<28x28xf32>
    %c1_103 = arith.constant 1 : index
    %c0_104 = arith.constant 0 : index
    %c0_105 = arith.constant 0 : index
    %c0_106 = arith.constant 0 : index
    %157 = vector.load %arg4[%c1_103, %c0_104, %c0_105, %c0_106] : memref<2x3x28x28xf32, #tpu.memory_space<vmem>>, vector<1x1x28x28xf32>
    %158 = vector.shape_cast %157 : vector<1x1x28x28xf32> to vector<28x28xf32>
    %159 = vector.shape_cast %156 : vector<28x28xf32> to vector<1x1x28x28xf32>
    tpu.vector_store %arg4[%c1_103, %c0_104, %c0_105, %c0_106], %159 {strides = array<i32>} : memref<2x3x28x28xf32, #tpu.memory_space<vmem>>, vector<1x1x28x28xf32>,
    %160 = vector.extract_strided_slice %143 {offsets = [28, 28], sizes = [28, 28], strides = [1, 1]} : vector<56x84xf32> to vector<28x28xf32>
    %c1_107 = arith.constant 1 : index
    %c1_108 = arith.constant 1 : index
    %c0_109 = arith.constant 0 : index
    %c0_110 = arith.constant 0 : index
    %161 = vector.load %arg4[%c1_107, %c1_108, %c0_109, %c0_110] : memref<2x3x28x28xf32, #tpu.memory_space<vmem>>, vector<1x1x28x28xf32>
    %162 = vector.shape_cast %161 : vector<1x1x28x28xf32> to vector<28x28xf32>
    %163 = vector.shape_cast %160 : vector<28x28xf32> to vector<1x1x28x28xf32>
    tpu.vector_store %arg4[%c1_107, %c1_108, %c0_109, %c0_110], %163 {strides = array<i32>} : memref<2x3x28x28xf32, #tpu.memory_space<vmem>>, vector<1x1x28x28xf32>,
    %164 = vector.extract_strided_slice %143 {offsets = [28, 56], sizes = [28, 28], strides = [1, 1]} : vector<56x84xf32> to vector<28x28xf32>
    %c1_111 = arith.constant 1 : index
    %c2_112 = arith.constant 2 : index
    %c0_113 = arith.constant 0 : index
    %c0_114 = arith.constant 0 : index
    %165 = vector.load %arg4[%c1_111, %c2_112, %c0_113, %c0_114] : memref<2x3x28x28xf32, #tpu.memory_space<vmem>>, vector<1x1x28x28xf32>
    %166 = vector.shape_cast %165 : vector<1x1x28x28xf32> to vector<28x28xf32>
    %167 = vector.shape_cast %164 : vector<28x28xf32> to vector<1x1x28x28xf32>
    tpu.vector_store %arg4[%c1_111, %c2_112, %c0_113, %c0_114], %167 {strides = array<i32>} : memref<2x3x28x28xf32, #tpu.memory_space<vmem>>, vector<1x1x28x28xf32>,
    return
  }
}

</mosaic_0001>

<llo_original>
// kernel: forward.1
$region0: #{forward.1}
  #allocation0 [shape = 'u32[]', space=smem, size = 0x4, offset = 0x4, fixed_abs, tag = 'smem constant byte address 0x4 - core index']
  #allocation1 [shape = 'u32[144,128]{1,0:T(1,128)}', space=vmem, size = 0x12000, scoped, tag = 'internal scratch']
  #allocation2 [shape = 'f32[58,84]{1,0:T(8,128)}', space=vmem, size = 0x8000, scoped, tag = 'scratch operand']
  #allocation3 [shape = 'f32[30,56]{1,0:T(8,128)}', space=vmem, size = 0x4000, scoped, tag = 'scratch operand']
  %s0 = inlined_call_operand.vmem [shape: f32[2,3,28,28], index: 0, kind: input, shape index: {}]
  %s1 = inlined_call_operand.hbm [shape: bf16[1408,128], index: 1, kind: input, shape index: {}]
  %s2 = inlined_call_operand.vmem [shape: bf16[16,392], index: 2, kind: input, shape index: {}]
  %s3 = inlined_call_operand.vmem [shape: f32[8,512], index: 3, kind: input, shape index: {}]
  %s4 = inlined_call_operand.vmem [shape: f32[2,3,28,28], index: 4, kind: output, shape index: {}]
  %s5 = sld [smem:[#allocation0]]
  $region30: #{forward.1} parent=0
    _
  %s7 = ssub.s32 1, %s5
  %s8 = scalar_select 0, %s7, %s5
  $region1: #{forward.1} parent=0
    #allocation4 [shape = 'u8[360448]{0}', space=vmem, size = 0x58000, scoped, tag = 'input window, operand 1, single buffered']
    #allocation5 [shape = 's32[1]{0}', space=sflag, size = 0x4, scoped, tag = 'scoped memory for forward.1']
    %9 = vsyncpa [#allocation5], 0
    // Predicated region
    $region2: #{forward.1} parent=1 // pred_check
      _
    $region3: #{forward.1} parent=1 // pred_check_branch
      %11 = sbr.rel (0) target = $region5
    $region4: #{forward.1} parent=1 // pred_region
      _
    $region5: #{forward.1} parent=1 // pred_fallthru
      _
    // Predicated region
    $region6: #{forward.1} parent=1 // pred_check
      _
    $region7: #{forward.1} parent=1 // pred_check_branch
      %13 = sbr.rel (0) target = $region9
    $region8: #{forward.1} parent=1 // pred_region
      %s15 = ssub.s32 11264, 11264
      %16 = vsyncadd [#allocation5], %s15
      %s17 = sshll.u32 [#allocation4], 4
      %s18 = int_to_ptr.vmem [resolvable:$true] %s17
      %23 = dma.hbm_to_vmem [thread:$0]  %s1, 11264, %s18, [#allocation5], 64, 64, 4
    $region9: #{forward.1} parent=1 // pred_fallthru
      _
    // Predicated region
    $region10: #{forward.1} parent=1 // pred_check
      _
    $region11: #{forward.1} parent=1 // pred_check_branch
      %25 = sbr.rel (0) target = $region13
    $region12: #{forward.1} parent=1 // pred_region
      _
    $region13: #{forward.1} parent=1 // pred_fallthru
      _
    // Predicated region
    $region14: #{forward.1} parent=1 // pred_check
      _
    $region15: #{forward.1} parent=1 // pred_check_branch
      %27 = sbr.rel (0) target = $region17
    $region16: #{forward.1} parent=1 // pred_region
      _
    $region17: #{forward.1} parent=1 // pred_fallthru
      _
    // Predicated region
    $region18: #{forward.1} parent=1 // pred_check
      _
    $region19: #{forward.1} parent=1 // pred_check_branch
      %29 = sbr.rel (0) target = $region21
    $region20: #{forward.1} parent=1 // pred_region
      %30 = dma.done [#allocation5], 11264
    $region21: #{forward.1} parent=1 // pred_fallthru
      _
    %vm32 = vcmask 679936
    %33 = vst.msk [vmem:[#allocation2] sm:$0x1] %vm32, 0.0
    %v34 = vld [vmem:[%s0] sm:$0xff]
    %v35 = vld [vmem:[%s0 + $0x8] sm:$0xff]
    %v36 = vld [vmem:[%s0 + $0x10] sm:$0xff]
    %v37 = vld [vmem:[%s0 + $0x18] sm:$0xf]
    %s38 = scalar_lea.vmem %s0, 32
    %v39 = vld [vmem:[%s38] sm:$0xff]
    %v40 = vld [vmem:[%s38 + $0x8] sm:$0xff]
    %v41 = vld [vmem:[%s38 + $0x10] sm:$0xff]
    %v42 = vld [vmem:[%s38 + $0x18] sm:$0xf]
    %s43 = scalar_lea.vmem %s0, 64
    %v44 = vld [vmem:[%s43] sm:$0xff]
    %v45 = vld [vmem:[%s43 + $0x8] sm:$0xff]
    %v46 = vld [vmem:[%s43 + $0x10] sm:$0xff]
    %v47 = vld [vmem:[%s43 + $0x18] sm:$0xf]
    %52 = vrot.lane.b32.xlu0 %v39, 28
    %v53 = vpop.permute.xlu0 %52
    %54 = vrot.lane.b32.xlu0 %v40, 28
    %v55 = vpop.permute.xlu0 %54
    %56 = vrot.lane.b32.xlu0 %v41, 28
    %v57 = vpop.permute.xlu0 %56
    %58 = vrot.lane.b32.xlu0 %v42, 28
    %v59 = vpop.permute.xlu0 %58
    %68 = vrot.lane.b32.xlu0 %v44, 56
    %v69 = vpop.permute.xlu0 %68
    %70 = vrot.lane.b32.xlu0 %v45, 56
    %v71 = vpop.permute.xlu0 %70
    %72 = vrot.lane.b32.xlu0 %v46, 56
    %v73 = vpop.permute.xlu0 %72
    %74 = vrot.lane.b32.xlu0 %v47, 56
    %v75 = vpop.permute.xlu0 %74
    %vm80 = vcmask 228352
    %v81 = vsel %vm80, %v34, %v53
    %v82 = vsel %vm80, %v35, %v55
    %v83 = vsel %vm80, %v36, %v57
    %v84 = vsel %vm80, %v37, %v59
    %vm85 = vcmask 457728
    %v86 = vsel %vm85, %v81, %v69
    %v87 = vsel %vm85, %v82, %v71
    %v88 = vsel %vm85, %v83, %v73
    %v89 = vsel %vm85, %v84, %v75
    %vm90 = vcmask 687104
    %91 = vst.msk [vmem:[#allocation2 + $0x1] sm:$0xff] %vm90, %v86
    %92 = vst.msk [vmem:[#allocation2 + $0x9] sm:$0xff] %vm90, %v87
    %93 = vst.msk [vmem:[#allocation2 + $0x11] sm:$0xff] %vm90, %v88
    %vm94 = vcmask 683008
    %95 = vst.msk [vmem:[#allocation2 + $0x19] sm:$0xf] %vm94, %v89
    %96 = vst.msk [vmem:[#allocation2 + $0x1d] sm:$0x1] %vm32, 0.0
    %s97 = scalar_lea.vmem %s0, 96
    %v98 = vld [vmem:[%s97] sm:$0xff]
    %v99 = vld [vmem:[%s97 + $0x8] sm:$0xff]
    %v100 = vld [vmem:[%s97 + $0x10] sm:$0xff]
    %v101 = vld [vmem:[%s97 + $0x18] sm:$0xf]
    %s102 = scalar_lea.vmem %s0, 128
    %v103 = vld [vmem:[%s102] sm:$0xff]
    %v104 = vld [vmem:[%s102 + $0x8] sm:$0xff]
    %v105 = vld [vmem:[%s102 + $0x10] sm:$0xff]
    %v106 = vld [vmem:[%s102 + $0x18] sm:$0xf]
    %s107 = scalar_lea.vmem %s0, 160
    %v108 = vld [vmem:[%s107] sm:$0xff]
    %v109 = vld [vmem:[%s107 + $0x8] sm:$0xff]
    %v110 = vld [vmem:[%s107 + $0x10] sm:$0xff]
    %v111 = vld [vmem:[%s107 + $0x18] sm:$0xf]
    %116 = vrot.lane.b32.xlu0 %v103, 28
    %v117 = vpop.permute.xlu0 %116
    %118 = vrot.lane.b32.xlu0 %v104, 28
    %v119 = vpop.permute.xlu0 %118
    %120 = vrot.lane.b32.xlu0 %v105, 28
    %v121 = vpop.permute.xlu0 %120
    %122 = vrot.lane.b32.xlu0 %v106, 28
    %v123 = vpop.permute.xlu0 %122
    %132 = vrot.lane.b32.xlu0 %v108, 56
    %v133 = vpop.permute.xlu0 %132
    %134 = vrot.lane.b32.xlu0 %v109, 56
    %v135 = vpop.permute.xlu0 %134
    %136 = vrot.lane.b32.xlu0 %v110, 56
    %v137 = vpop.permute.xlu0 %136
    %138 = vrot.lane.b32.xlu0 %v111, 56
    %v139 = vpop.permute.xlu0 %138
    %v144 = vsel %vm80, %v98, %v117
    %v145 = vsel %vm80, %v99, %v119
    %v146 = vsel %vm80, %v100, %v121
    %v147 = vsel %vm80, %v101, %v123
    %v148 = vsel %vm85, %v144, %v133
    %v149 = vsel %vm85, %v145, %v135
    %v150 = vsel %vm85, %v146, %v137
    %v151 = vsel %vm85, %v147, %v139
    %152 = vst.msk [vmem:[#allocation2 + $0x1e] sm:$0xff] %vm90, %v148
    %153 = vst.msk [vmem:[#allocation2 + $0x26] sm:$0xff] %vm90, %v149
    %154 = vst.msk [vmem:[#allocation2 + $0x2e] sm:$0xff] %vm90, %v150
    %155 = vst.msk [vmem:[#allocation2 + $0x36] sm:$0xf] %vm94, %v151
    %v156 = vld [vmem:[#allocation2] ss:$2 sm:$0xff]
    %s157 = scalar_lea.vmem [#allocation2], 16
    %v158 = vld [vmem:[%s157] ss:$2 sm:$0x3f]
    %s159 = scalar_lea.vmem [#allocation2], 29
    %v160 = vld [vmem:[%s159] ss:$2 sm:$0xff]
    %s161 = scalar_lea.vmem [#allocation2], 45
    %v162 = vld [vmem:[%s161] ss:$2 sm:$0x3f]
    %vm165 = vcmask 1045504
    %v166 = vrot.slane %v160, 2
    %v167 = vrot.slane %v162, 2
    %v168 = vsel %vm165, %v166, %v167
    %v172 = vsel %vm165, %v158, %v166
    %s173 = scalar_lea.vmem [#allocation2], 1
    %v174 = vld [vmem:[%s173] ss:$2 sm:$0xff]
    %s175 = scalar_lea.vmem [#allocation2], 17
    %v176 = vld [vmem:[%s175] ss:$2 sm:$0x3f]
    %s177 = scalar_lea.vmem [#allocation2], 30
    %v178 = vld [vmem:[%s177] ss:$2 sm:$0xff]
    %s179 = scalar_lea.vmem [#allocation2], 46
    %v180 = vld [vmem:[%s179] ss:$2 sm:$0x3f]
    %v183 = vrot.slane %v178, 2
    %v184 = vrot.slane %v180, 2
    %v185 = vsel %vm165, %v183, %v184
    %v187 = vsel %vm165, %v176, %v183
    %s188 = scalar_lea.vmem [#allocation2], 2
    %v189 = vld [vmem:[%s188] ss:$2 sm:$0xff]
    %s190 = scalar_lea.vmem [#allocation2], 18
    %v191 = vld [vmem:[%s190] ss:$2 sm:$0x3f]
    %s192 = scalar_lea.vmem [#allocation2], 31
    %v193 = vld [vmem:[%s192] ss:$2 sm:$0xff]
    %s194 = scalar_lea.vmem [#allocation2], 47
    %v195 = vld [vmem:[%s194] ss:$2 sm:$0x3f]
    %v198 = vrot.slane %v193, 2
    %v199 = vrot.slane %v195, 2
    %v200 = vsel %vm165, %v198, %v199
    %v202 = vsel %vm165, %v191, %v198
    %205 = vrot.lane.b32.xlu0 %v174, 84
    %v206 = vpop.permute.xlu0 %205
    %207 = vrot.lane.b32.xlu0 %v187, 84
    %v208 = vpop.permute.xlu0 %207
    %209 = vrot.lane.b32.xlu0 %v185, 84
    %v210 = vpop.permute.xlu0 %209
    %211 = vrot.lane.b32.xlu0 %v184, 84
    %v212 = vpop.permute.xlu0 %211
    %219 = vrot.lane.b32.xlu0 %v189, 40
    %v220 = vpop.permute.xlu0 %219
    %221 = vrot.lane.b32.xlu0 %v202, 40
    %v222 = vpop.permute.xlu0 %221
    %223 = vrot.lane.b32.xlu0 %v200, 40
    %v224 = vpop.permute.xlu0 %223
    %225 = vrot.lane.b32.xlu0 %v199, 40
    %v226 = vpop.permute.xlu0 %225
    %v231 = vsel %vm90, %v156, %v206
    %v232 = vsel %vm90, %v172, %v208
    %v233 = vsel %vm90, %v168, %v210
    %v234 = vsel %vm90, %v167, %v212
    %vm235 = vcmask 326656
    %v236 = vsel %vm235, %v206, %v220
    %v237 = vsel %vm235, %v208, %v222
    %v238 = vsel %vm235, %v210, %v224
    %v239 = vsel %vm235, %v212, %v226
    %v240 = vpack.c.bf16 %v232, %v231
    %v241 = vpack.c.bf16 %v237, %v236
    %v242 = vpack.c.bf16 %v234, %v233
    %v243 = vpack.c.bf16 %v239, %v238
    %v244 = vld [vmem:[#allocation4] sm:$0xf]
    %v245 = vld [vmem:[#allocation4 + $0x4] sm:$0xf]
    %v246 = vld [vmem:[#allocation4 + $0x8] sm:$0xf]
    %v247 = vld [vmem:[#allocation4 + $0xc] sm:$0xf]
    %v248 = vld [vmem:[#allocation4 + $0x10] sm:$0xf]
    %v249 = vld [vmem:[#allocation4 + $0x14] sm:$0xf]
    %v250 = vld [vmem:[#allocation4 + $0x18] sm:$0xf]
    %v251 = vld [vmem:[#allocation4 + $0x1c] sm:$0xf]
    %v252 = vld [vmem:[#allocation4 + $0x20] sm:$0xf]
    %v253 = vld [vmem:[#allocation4 + $0x24] sm:$0xf]
    %v254 = vld [vmem:[#allocation4 + $0x28] sm:$0xf]
    %v255 = vld [vmem:[#allocation4 + $0x2c] sm:$0xf]
    %v256 = vld [vmem:[#allocation4 + $0x30] sm:$0xf]
    %v257 = vld [vmem:[#allocation4 + $0x34] sm:$0xf]
    %v258 = vld [vmem:[#allocation4 + $0x38] sm:$0xf]
    %v259 = vld [vmem:[#allocation4 + $0x3c] sm:$0xf]
    %v260 = vld [vmem:[#allocation4 + $0x40] sm:$0xf]
    %v261 = vld [vmem:[#allocation4 + $0x44] sm:$0xf]
    %v262 = vld [vmem:[#allocation4 + $0x48] sm:$0xf]
    %v263 = vld [vmem:[#allocation4 + $0x4c] sm:$0xf]
    %v264 = vld [vmem:[#allocation4 + $0x50] sm:$0xf]
    %v265 = vld [vmem:[#allocation4 + $0x54] sm:$0xf]
    %v266 = vld [vmem:[#allocation4 + $0x58] sm:$0xf]
    %v267 = vld [vmem:[#allocation4 + $0x5c] sm:$0xf]
    %v268 = vld [vmem:[#allocation4 + $0x60] sm:$0xf]
    %v269 = vld [vmem:[#allocation4 + $0x64] sm:$0xf]
    %v270 = vld [vmem:[#allocation4 + $0x68] sm:$0xf]
    %v271 = vld [vmem:[#allocation4 + $0x6c] sm:$0xf]
    %v272 = vld [vmem:[#allocation4 + $0x70] sm:$0xf]
    %v273 = vld [vmem:[#allocation4 + $0x74] sm:$0xf]
    %v274 = vld [vmem:[#allocation4 + $0x78] sm:$0xf]
    %v275 = vld [vmem:[#allocation4 + $0x7c] sm:$0x3]
    %v276 = vld [vmem:[%s3] ss:$0 sm:$0xff]
    %v309 = vunpack.c.l.b16 %v244
    %v310 = vunpack.c.l.b16 %v245
    %v311 = vunpack.c.l.b16 %v246
    %v312 = vunpack.c.l.b16 %v247
    %v313 = vunpack.c.l.b16 %v248
    %v314 = vunpack.c.l.b16 %v249
    %v315 = vunpack.c.l.b16 %v250
    %v316 = vunpack.c.l.b16 %v251
    %v317 = vunpack.c.l.b16 %v252
    %v318 = vunpack.c.l.b16 %v253
    %v319 = vunpack.c.l.b16 %v254
    %v320 = vunpack.c.l.b16 %v255
    %v321 = vunpack.c.l.b16 %v256
    %v322 = vunpack.c.l.b16 %v257
    %v323 = vunpack.c.l.b16 %v258
    %v324 = vunpack.c.l.b16 %v259
    %v325 = vunpack.c.l.b16 %v260
    %v326 = vunpack.c.l.b16 %v261
    %v327 = vunpack.c.l.b16 %v262
    %v328 = vunpack.c.l.b16 %v263
    %v329 = vunpack.c.l.b16 %v264
    %v330 = vunpack.c.l.b16 %v265
    %v331 = vunpack.c.l.b16 %v266
    %v332 = vunpack.c.l.b16 %v267
    %v333 = vunpack.c.l.b16 %v268
    %v334 = vunpack.c.l.b16 %v269
    %v335 = vunpack.c.l.b16 %v270
    %v336 = vunpack.c.l.b16 %v271
    %v337 = vunpack.c.l.b16 %v272
    %v338 = vunpack.c.l.b16 %v273
    %v339 = vunpack.c.l.b16 %v274
    %v340 = vunpack.c.l.b16 %v275
    %v341 = vpack.c.b16 %v310, %v309
    %v342 = vpack.c.b16 %v312, %v311
    %v343 = vpack.c.b16 %v314, %v313
    %v344 = vpack.c.b16 %v316, %v315
    %v345 = vpack.c.b16 %v318, %v317
    %v346 = vpack.c.b16 %v320, %v319
    %v347 = vpack.c.b16 %v322, %v321
    %v348 = vpack.c.b16 %v324, %v323
    %v349 = vpack.c.b16 %v326, %v325
    %v350 = vpack.c.b16 %v328, %v327
    %v351 = vpack.c.b16 %v330, %v329
    %v352 = vpack.c.b16 %v332, %v331
    %v353 = vpack.c.b16 %v334, %v333
    %v354 = vpack.c.b16 %v336, %v335
    %v355 = vpack.c.b16 %v338, %v337
    %v356 = vpack.c.b16 %v340, %v339
    %vm372 = vcmask 1014784
    %v374 = vsel %vm372, %v241, 0
    %v377 = vsel %vm372, %v243, 0
    %v380 = vsel %vm165, %v356, 0
    %382 = vmatprep.subr.bf16.mxu0 0
    %383 = vmatpush1.bf16.msra.mxu0 %v341
    %384 = vmatprep.subr.bf16.mxu0 0
    %385 = vmatpush1.bf16.msra.mxu0 %v342
    %386 = vmatprep.subr.bf16.mxu0 0
    %387 = vmatpush1.bf16.msra.mxu0 %v343
    %388 = vmatprep.subr.bf16.mxu0 0
    %389 = vmatpush1.bf16.msra.mxu0 %v344
    %390 = vmatprep.subr.bf16.mxu0 0
    %391 = vmatpush1.bf16.msra.mxu0 %v345
    %392 = vmatprep.subr.bf16.mxu0 0
    %393 = vmatpush1.bf16.msra.mxu0 %v346
    %394 = vmatprep.subr.bf16.mxu0 0
    %395 = vmatpush1.bf16.msra.mxu0 %v347
    %396 = vmatprep.subr.bf16.mxu0 0
    %397 = vmatpush1.bf16.msra.mxu0 %v348
    %398 = vmatprep.subr.bf16.mxu0 0
    %399 = vmatpush1.bf16.msra.mxu0 %v349
    %400 = vmatprep.subr.bf16.mxu0 0
    %401 = vmatpush1.bf16.msra.mxu0 %v350
    %402 = vmatprep.subr.bf16.mxu0 0
    %403 = vmatpush1.bf16.msra.mxu0 %v351
    %404 = vmatprep.subr.bf16.mxu0 0
    %405 = vmatpush1.bf16.msra.mxu0 %v352
    %406 = vmatprep.subr.bf16.mxu0 0
    %407 = vmatpush1.bf16.msra.mxu0 %v353
    %408 = vmatprep.subr.bf16.mxu0 0
    %409 = vmatpush1.bf16.msra.mxu0 %v354
    %410 = vmatprep.subr.bf16.mxu0 0
    %411 = vmatpush1.bf16.msra.mxu0 %v355
    %412 = vmatprep.subr.bf16.mxu0 0
    %413 = vmatpush1.bf16.msra.mxu0 %v380
    %414 = vmatprep.mubr.bf16.mxu0 %v374
    %415 = vmatmul.mubr.bf16.gmra.mrb[0].mxu0 %v240
    %v416 = vpop.f32.mrb[0].mxu0
    %v417 = vadd.f32 %v276, %v416
    %v418 = vpop.f32.mrb[0].mxu0
    %v419 = vpop.f32.mrb[0].mxu0
    %v420 = vadd.f32 %v276, %v419
    %v421 = vpop.f32.mrb[0].mxu0
    %422 = vmatprep.mubr.bf16.mxu0 %v377
    %423 = vmatmul.mubr.bf16.gmra.mrb[0].mxu0 %v242
    %v424 = vpop.f32.mrb[0].mxu0
    %v425 = vadd.f32 %v276, %v424
    %v426 = vpop.f32.mrb[0].mxu0
    %v427 = vpop.f32.mrb[0].mxu0
    %v428 = vadd.f32 %v276, %v427
    %v429 = vpop.f32.mrb[0].mxu0
    %430 = vdwg.mxu0
    %v431 = vmax.f32 %v417, 0.0
    %v432 = vmax.f32 %v420, 0.0
    %v433 = vmax.f32 %v425, 0.0
    %v434 = vmax.f32 %v428, 0.0
    %vm435 = vcmask 450560
    %436 = vst.msk [vmem:[#allocation3] sm:$0x1] %vm435, 0.0
    %437 = vst.msk [vmem:[#allocation3 + $0x1] sm:$0xff] %vm85, %v431
    %vm438 = vcmask 455680
    %439 = vst.msk [vmem:[#allocation3 + $0x9] sm:$0x3f] %vm438, %v432
    %440 = vst.msk [vmem:[#allocation3 + $0xf] sm:$0x1] %vm435, 0.0
    %vm441 = vcmask 457734
    %442 = vst.msk [vmem:[#allocation3 + $0xa] sm:$0xc0] %vm441, %v432
    %443 = vst.msk [vmem:[#allocation3 + $0x12] sm:$0xff] %vm85, %v433
    %vm444 = vcmask 453632
    %445 = vst.msk [vmem:[#allocation3 + $0x1a] sm:$0xf] %vm444, %v434
    %v446 = vld [vmem:[#allocation3] ss:$2 sm:$0x7f]
    %s447 = scalar_lea.vmem [#allocation3], 15
    %v448 = vld [vmem:[%s447] ss:$2 sm:$0x7f]
    %v450 = vrot.slane %v448, 1
    %vm452 = vcmask 1046528
    %v453 = vsel %vm452, %v446, %v450
    %s454 = scalar_lea.vmem [#allocation3], 1
    %v455 = vld [vmem:[%s454] ss:$2 sm:$0x7f]
    %s456 = scalar_lea.vmem [#allocation3], 16
    %v457 = vld [vmem:[%s456] ss:$2 sm:$0x7f]
    %v459 = vrot.slane %v457, 1
    %v461 = vsel %vm452, %v455, %v459
    %s462 = scalar_lea.vmem [#allocation3], 2
    %v463 = vld [vmem:[%s462] ss:$2 sm:$0x7f]
    %s464 = scalar_lea.vmem [#allocation3], 17
    %v465 = vld [vmem:[%s464] ss:$2 sm:$0x7f]
    %v467 = vrot.slane %v465, 1
    %v469 = vsel %vm452, %v463, %v467
    %471 = vrot.lane.b32.xlu0 %v461, 56
    %v472 = vpop.permute.xlu0 %471
    %473 = vrot.lane.b32.xlu0 %v459, 56
    %v474 = vpop.permute.xlu0 %473
    %478 = vrot.lane.b32.xlu0 %v469, 112
    %v479 = vpop.permute.xlu0 %478
    %480 = vrot.lane.b32.xlu0 %v467, 112
    %v481 = vpop.permute.xlu0 %480
    %v484 = vsel %vm85, %v453, %v472
    %v485 = vsel %vm85, %v450, %v474
    %vm486 = vcmask 916480
    %v487 = vsel %vm486, %v484, %v479
    %v488 = vsel %vm486, %v485, %v481
    %v489 = vpack.c.bf16 %v488, %v487
    %v490 = vpack.c.bf16 %v481, %v479
    %v491 = vld [vmem:[#allocation4 + $0x80] sm:$0xf]
    %v492 = vld [vmem:[#allocation4 + $0x84] sm:$0xf]
    %v493 = vld [vmem:[#allocation4 + $0x88] sm:$0xf]
    %v494 = vld [vmem:[#allocation4 + $0x8c] sm:$0xf]
    %v495 = vld [vmem:[#allocation4 + $0x90] sm:$0xf]
    %v496 = vld [vmem:[#allocation4 + $0x94] sm:$0xf]
    %v497 = vld [vmem:[#allocation4 + $0x98] sm:$0xf]
    %v498 = vld [vmem:[#allocation4 + $0x9c] sm:$0xf]
    %v499 = vld [vmem:[#allocation4 + $0xa0] sm:$0xf]
    %v500 = vld [vmem:[#allocation4 + $0xa4] sm:$0xf]
    %v501 = vld [vmem:[#allocation4 + $0xa8] sm:$0xf]
    %v502 = vld [vmem:[#allocation4 + $0xac] sm:$0xf]
    %v503 = vld [vmem:[#allocation4 + $0xb0] sm:$0xf]
    %v504 = vld [vmem:[#allocation4 + $0xb4] sm:$0xf]
    %v505 = vld [vmem:[#allocation4 + $0xb8] sm:$0xf]
    %v506 = vld [vmem:[#allocation4 + $0xbc] sm:$0xf]
    %v507 = vld [vmem:[#allocation4 + $0xc0] sm:$0xf]
    %v508 = vld [vmem:[#allocation4 + $0xc4] sm:$0xf]
    %v509 = vld [vmem:[#allocation4 + $0xc8] sm:$0xf]
    %v510 = vld [vmem:[#allocation4 + $0xcc] sm:$0xf]
    %v511 = vld [vmem:[#allocation4 + $0xd0] sm:$0xf]
    %v512 = vld [vmem:[%s3 + $0x1] ss:$0 sm:$0xff]
    %v534 = vunpack.c.l.b16 %v491
    %v535 = vunpack.c.l.b16 %v492
    %v536 = vunpack.c.l.b16 %v493
    %v537 = vunpack.c.l.b16 %v494
    %v538 = vunpack.c.l.b16 %v495
    %v539 = vunpack.c.l.b16 %v496
    %v540 = vunpack.c.l.b16 %v497
    %v541 = vunpack.c.l.b16 %v498
    %v542 = vunpack.c.l.b16 %v499
    %v543 = vunpack.c.l.b16 %v500
    %v544 = vunpack.c.l.b16 %v501
    %v545 = vunpack.c.l.b16 %v502
    %v546 = vunpack.c.l.b16 %v503
    %v547 = vunpack.c.l.b16 %v504
    %v548 = vunpack.c.l.b16 %v505
    %v549 = vunpack.c.l.b16 %v506
    %v550 = vunpack.c.l.b16 %v507
    %v551 = vunpack.c.l.b16 %v508
    %v552 = vunpack.c.l.b16 %v509
    %v553 = vunpack.c.l.b16 %v510
    %v554 = vunpack.c.l.b16 %v511
    %v555 = vpack.c.b16 %v535, %v534
    %v556 = vpack.c.b16 %v537, %v536
    %v557 = vpack.c.b16 %v539, %v538
    %v558 = vpack.c.b16 %v541, %v540
    %v559 = vpack.c.b16 %v543, %v542
    %v560 = vpack.c.b16 %v545, %v544
    %v561 = vpack.c.b16 %v547, %v546
    %v562 = vpack.c.b16 %v549, %v548
    %v563 = vpack.c.b16 %v551, %v550
    %v564 = vpack.c.b16 %v553, %v552
    %v565 = vpack.c.b16 %v554, %v554
    %v577 = vsel %vm235, %v490, 0
    %vm579 = vcmask 1043456
    %v581 = vsel %vm579, %v565, 0
    %583 = vmatprep.subr.bf16.mxu0 0
    %584 = vmatpush1.bf16.msra.mxu0 %v555
    %585 = vmatprep.subr.bf16.mxu0 0
    %586 = vmatpush1.bf16.msra.mxu0 %v556
    %587 = vmatprep.subr.bf16.mxu0 0
    %588 = vmatpush1.bf16.msra.mxu0 %v557
    %589 = vmatprep.subr.bf16.mxu0 0
    %590 = vmatpush1.bf16.msra.mxu0 %v558
    %591 = vmatprep.subr.bf16.mxu0 0
    %592 = vmatpush1.bf16.msra.mxu0 %v559
    %593 = vmatprep.subr.bf16.mxu0 0
    %594 = vmatpush1.bf16.msra.mxu0 %v560
    %595 = vmatprep.subr.bf16.mxu0 0
    %596 = vmatpush1.bf16.msra.mxu0 %v561
    %597 = vmatprep.subr.bf16.mxu0 0
    %598 = vmatpush1.bf16.msra.mxu0 %v562
    %599 = vmatprep.subr.bf16.mxu0 0
    %600 = vmatpush1.bf16.msra.mxu0 %v563
    %601 = vmatprep.subr.bf16.mxu0 0
    %602 = vmatpush1.bf16.msra.mxu0 %v564
    %603 = vmatprep.subr.bf16.mxu0 0
    %604 = vmatpush1.bf16.msra.mxu0 %v581
    %605 = vmatprep.subr.bf16.mxu0 0
    %606 = vmatpush1.bf16.msra.mxu0 0
    %607 = vmatprep.subr.bf16.mxu0 0
    %608 = vmatpush1.bf16.msra.mxu0 0
    %609 = vmatprep.subr.bf16.mxu0 0
    %610 = vmatpush1.bf16.msra.mxu0 0
    %611 = vmatprep.subr.bf16.mxu0 0
    %612 = vmatpush1.bf16.msra.mxu0 0
    %613 = vmatprep.subr.bf16.mxu0 0
    %614 = vmatpush1.bf16.msra.mxu0 0
    %615 = vmatprep.mubr.bf16.mxu0 %v577
    %616 = vmatmul.mubr.bf16.gmra.mrb[0].mxu0 %v489
    %v617 = vpop.f32.mrb[0].mxu0
    %v618 = vadd.f32 %v512, %v617
    %v619 = vpop.f32.mrb[0].mxu0
    %v620 = vpop.f32.mrb[0].mxu0
    %v621 = vadd.f32 %v512, %v620
    %v622 = vpop.f32.mrb[0].mxu0
    %623 = vdwg.mxu0
    %v624 = vmax.f32 %v618, 0.0
    %v625 = vmax.f32 %v621, 0.0
    %v627 = vrot.slane %v624, 1
    %628 = vrot.lane.b32.xlu0 %v627, 56
    %v629 = vpop.permute.xlu0 %628
    %v631 = vrot.slane %v624, 2
    %632 = vrot.lane.b32.xlu0 %v631, 112
    %v633 = vpop.permute.xlu0 %632
    %v635 = vrot.slane %v624, 3
    %636 = vrot.lane.b32.xlu0 %v635, 40
    %v637 = vpop.permute.xlu0 %636
    %v639 = vrot.slane %v624, 4
    %640 = vrot.lane.b32.xlu0 %v639, 96
    %v641 = vpop.permute.xlu0 %640
    %v643 = vrot.slane %v624, 5
    %644 = vrot.lane.b32.xlu0 %v643, 24
    %v645 = vpop.permute.xlu0 %644
    %v647 = vrot.slane %v624, 6
    %648 = vrot.lane.b32.xlu0 %v647, 80
    %v649 = vpop.permute.xlu0 %648
    %v651 = vsel %vm85, %v624, %v629
    %v652 = vsel %vm486, %v651, %v633
    %v653 = vsel %vm235, %v633, %v637
    %vm654 = vcmask 785408
    %v655 = vsel %vm654, %v653, %v641
    %vm656 = vcmask 195584
    %v657 = vsel %vm656, %v641, %v645
    %vm658 = vcmask 654336
    %v659 = vsel %vm658, %v657, %v649
    %v661 = vrot.slane %v625, 1
    %662 = vrot.lane.b32.xlu0 %v661, 56
    %v663 = vpop.permute.xlu0 %662
    %v665 = vrot.slane %v625, 2
    %666 = vrot.lane.b32.xlu0 %v665, 112
    %v667 = vpop.permute.xlu0 %666
    %v669 = vrot.slane %v625, 3
    %670 = vrot.lane.b32.xlu0 %v669, 40
    %v671 = vpop.permute.xlu0 %670
    %v673 = vrot.slane %v625, 4
    %674 = vrot.lane.b32.xlu0 %v673, 96
    %v675 = vpop.permute.xlu0 %674
    %v677 = vrot.slane %v625, 5
    %678 = vrot.lane.b32.xlu0 %v677, 24
    %v679 = vpop.permute.xlu0 %678
    %v681 = vrot.slane %v625, 6
    %682 = vrot.lane.b32.xlu0 %v681, 80
    %v683 = vpop.permute.xlu0 %682
    %v685 = vsel %vm85, %v624, %v663
    %v686 = vsel %vm486, %v685, %v667
    %v687 = vsel %vm235, %v667, %v671
    %v688 = vsel %vm654, %v687, %v675
    %v689 = vsel %vm656, %v675, %v679
    %v690 = vsel %vm658, %v689, %v683
    %v694 = vrot.slane %v686, 6
    %v695 = vrot.slane %v688, 6
    %v696 = vrot.slane %v690, 6
    %v697 = vrot.slane %v683, 6
    %vm702 = vcmask 1040384
    %v703 = vsel %vm702, %v652, %v694
    %v704 = vsel %vm702, %v655, %v695
    %v705 = vsel %vm702, %v659, %v696
    %v706 = vsel %vm702, %v649, %v697
    %v707 = vpack.c.bf16 %v703, %v703
    %v708 = vpack.c.bf16 %v704, %v704
    %v709 = vpack.c.bf16 %v705, %v705
    %v710 = vpack.c.bf16 %v706, %v706
    %v711 = vld [vmem:[#allocation4 + $0xd4] sm:$0xf]
    %v712 = vld [vmem:[#allocation4 + $0xd8] sm:$0xf]
    %v713 = vld [vmem:[#allocation4 + $0xdc] sm:$0xf]
    %v714 = vld [vmem:[#allocation4 + $0xe0] sm:$0xf]
    %v715 = vld [vmem:[#allocation4 + $0xe4] sm:$0xf]
    %v716 = vld [vmem:[#allocation4 + $0xe8] sm:$0xf]
    %v717 = vld [vmem:[#allocation4 + $0xec] sm:$0xf]
    %v718 = vld [vmem:[#allocation4 + $0xf0] sm:$0xf]
    %v719 = vld [vmem:[#allocation4 + $0xf4] sm:$0xf]
    %v720 = vld [vmem:[#allocation4 + $0xf8] sm:$0xf]
    %v721 = vld [vmem:[#allocation4 + $0xfc] sm:$0xf]
    %v722 = vld [vmem:[#allocation4 + $0x100] sm:$0xf]
    %v723 = vld [vmem:[#allocation4 + $0x104] sm:$0xf]
    %v724 = vld [vmem:[#allocation4 + $0x108] sm:$0xf]
    %v725 = vld [vmem:[#allocation4 + $0x10c] sm:$0xf]
    %v726 = vld [vmem:[#allocation4 + $0x110] sm:$0xf]
    %v727 = vld [vmem:[#allocation4 + $0x114] sm:$0xf]
    %v728 = vld [vmem:[#allocation4 + $0x118] sm:$0xf]
    %v729 = vld [vmem:[#allocation4 + $0x11c] sm:$0xf]
    %v730 = vld [vmem:[#allocation4 + $0x120] sm:$0xf]
    %v731 = vld [vmem:[#allocation4 + $0x124] sm:$0xf]
    %v732 = vld [vmem:[#allocation4 + $0x128] sm:$0xf]
    %v733 = vld [vmem:[#allocation4 + $0x12c] sm:$0xf]
    %v734 = vld [vmem:[#allocation4 + $0x130] sm:$0xf]
    %v735 = vld [vmem:[#allocation4 + $0x134] sm:$0xf]
    %v736 = vld [vmem:[#allocation4 + $0x138] sm:$0xf]
    %v737 = vld [vmem:[#allocation4 + $0x13c] sm:$0xf]
    %v738 = vld [vmem:[#allocation4 + $0x140] sm:$0xf]
    %v739 = vld [vmem:[#allocation4 + $0x144] sm:$0xf]
    %v740 = vld [vmem:[#allocation4 + $0x148] sm:$0xf]
    %v741 = vld [vmem:[#allocation4 + $0x14c] sm:$0xf]
    %v742 = vld [vmem:[#allocation4 + $0x150] sm:$0xf]
    %v743 = vld [vmem:[#allocation4 + $0x154] sm:$0xf]
    %v744 = vld [vmem:[#allocation4 + $0x158] sm:$0xf]
    %v745 = vld [vmem:[#allocation4 + $0x15c] sm:$0xf]
    %v746 = vld [vmem:[#allocation4 + $0x160] sm:$0xf]
    %v747 = vld [vmem:[#allocation4 + $0x164] sm:$0xf]
    %v748 = vld [vmem:[#allocation4 + $0x168] sm:$0xf]
    %v749 = vld [vmem:[#allocation4 + $0x16c] sm:$0xf]
    %v750 = vld [vmem:[#allocation4 + $0x170] sm:$0xf]
    %v751 = vld [vmem:[#allocation4 + $0x174] sm:$0xf]
    %v752 = vld [vmem:[#allocation4 + $0x178] sm:$0xf]
    %v753 = vld [vmem:[#allocation4 + $0x17c] sm:$0xf]
    %v754 = vld [vmem:[#allocation4 + $0x180] sm:$0xf]
    %v755 = vld [vmem:[#allocation4 + $0x184] sm:$0xf]
    %v756 = vld [vmem:[#allocation4 + $0x188] sm:$0xf]
    %v757 = vld [vmem:[#allocation4 + $0x18c] sm:$0xf]
    %v758 = vld [vmem:[#allocation4 + $0x190] sm:$0xf]
    %v759 = vld [vmem:[#allocation4 + $0x194] sm:$0xf]
    %v760 = vld [vmem:[%s3 + $0x2] ss:$0 sm:$0xff]
    %v810 = vunpack.c.l.b16 %v711
    %v811 = vunpack.c.l.b16 %v712
    %v812 = vunpack.c.l.b16 %v713
    %v813 = vunpack.c.l.b16 %v714
    %v814 = vunpack.c.l.b16 %v715
    %v815 = vunpack.c.l.b16 %v716
    %v816 = vunpack.c.l.b16 %v717
    %v817 = vunpack.c.l.b16 %v718
    %v818 = vunpack.c.l.b16 %v719
    %v819 = vunpack.c.l.b16 %v720
    %v820 = vunpack.c.l.b16 %v721
    %v821 = vunpack.c.l.b16 %v722
    %v822 = vunpack.c.l.b16 %v723
    %v823 = vunpack.c.l.b16 %v724
    %v824 = vunpack.c.l.b16 %v725
    %v825 = vunpack.c.l.b16 %v726
    %v826 = vunpack.c.l.b16 %v727
    %v827 = vunpack.c.l.b16 %v728
    %v828 = vunpack.c.l.b16 %v729
    %v829 = vunpack.c.l.b16 %v730
    %v830 = vunpack.c.l.b16 %v731
    %v831 = vunpack.c.l.b16 %v732
    %v832 = vunpack.c.l.b16 %v733
    %v833 = vunpack.c.l.b16 %v734
    %v834 = vunpack.c.l.b16 %v735
    %v835 = vunpack.c.l.b16 %v736
    %v836 = vunpack.c.l.b16 %v737
    %v837 = vunpack.c.l.b16 %v738
    %v838 = vunpack.c.l.b16 %v739
    %v839 = vunpack.c.l.b16 %v740
    %v840 = vunpack.c.l.b16 %v741
    %v841 = vunpack.c.l.b16 %v742
    %v842 = vunpack.c.l.b16 %v743
    %v843 = vunpack.c.l.b16 %v744
    %v844 = vunpack.c.l.b16 %v745
    %v845 = vunpack.c.l.b16 %v746
    %v846 = vunpack.c.l.b16 %v747
    %v847 = vunpack.c.l.b16 %v748
    %v848 = vunpack.c.l.b16 %v749
    %v849 = vunpack.c.l.b16 %v750
    %v850 = vunpack.c.l.b16 %v751
    %v851 = vunpack.c.l.b16 %v752
    %v852 = vunpack.c.l.b16 %v753
    %v853 = vunpack.c.l.b16 %v754
    %v854 = vunpack.c.l.b16 %v755
    %v855 = vunpack.c.l.b16 %v756
    %v856 = vunpack.c.l.b16 %v757
    %v857 = vunpack.c.l.b16 %v758
    %v858 = vunpack.c.l.b16 %v759
    %v859 = vpack.c.b16 %v811, %v810
    %v860 = vpack.c.b16 %v813, %v812
    %v861 = vpack.c.b16 %v815, %v814
    %v862 = vpack.c.b16 %v817, %v816
    %v863 = vpack.c.b16 %v819, %v818
    %v864 = vpack.c.b16 %v821, %v820
    %v865 = vpack.c.b16 %v823, %v822
    %v866 = vpack.c.b16 %v825, %v824
    %v867 = vpack.c.b16 %v827, %v826
    %v868 = vpack.c.b16 %v829, %v828
    %v869 = vpack.c.b16 %v831, %v830
    %v870 = vpack.c.b16 %v833, %v832
    %v871 = vpack.c.b16 %v835, %v834
    %v872 = vpack.c.b16 %v837, %v836
    %v873 = vpack.c.b16 %v839, %v838
    %v874 = vpack.c.b16 %v841, %v840
    %v875 = vpack.c.b16 %v843, %v842
    %v876 = vpack.c.b16 %v845, %v844
    %v877 = vpack.c.b16 %v847, %v846
    %v878 = vpack.c.b16 %v849, %v848
    %v879 = vpack.c.b16 %v851, %v850
    %v880 = vpack.c.b16 %v853, %v852
    %v881 = vpack.c.b16 %v855, %v854
    %v882 = vpack.c.b16 %v857, %v856
    %v883 = vpack.c.b16 %v858, %v858
    %vm908 = vcmask 64512
    %v910 = vsel %vm908, %v710, 0
    %v913 = vsel %vm579, %v883, 0
    %915 = vmatprep.subr.bf16.mxu0 0
    %916 = vmatpush1.bf16.msra.mxu0 %v859
    %917 = vmatprep.subr.bf16.mxu0 0
    %918 = vmatpush1.bf16.msra.mxu0 %v860
    %919 = vmatprep.subr.bf16.mxu0 0
    %920 = vmatpush1.bf16.msra.mxu0 %v861
    %921 = vmatprep.subr.bf16.mxu0 0
    %922 = vmatpush1.bf16.msra.mxu0 %v862
    %923 = vmatprep.subr.bf16.mxu0 0
    %924 = vmatpush1.bf16.msra.mxu0 %v863
    %925 = vmatprep.subr.bf16.mxu0 0
    %926 = vmatpush1.bf16.msra.mxu0 %v864
    %927 = vmatprep.subr.bf16.mxu0 0
    %928 = vmatpush1.bf16.msra.mxu0 %v865
    %929 = vmatprep.subr.bf16.mxu0 0
    %930 = vmatpush1.bf16.msra.mxu0 %v866
    %931 = vmatprep.subr.bf16.mxu0 0
    %932 = vmatpush1.bf16.msra.mxu0 %v867
    %933 = vmatprep.subr.bf16.mxu0 0
    %934 = vmatpush1.bf16.msra.mxu0 %v868
    %935 = vmatprep.subr.bf16.mxu0 0
    %936 = vmatpush1.bf16.msra.mxu0 %v869
    %937 = vmatprep.subr.bf16.mxu0 0
    %938 = vmatpush1.bf16.msra.mxu0 %v870
    %939 = vmatprep.subr.bf16.mxu0 0
    %940 = vmatpush1.bf16.msra.mxu0 %v871
    %941 = vmatprep.subr.bf16.mxu0 0
    %942 = vmatpush1.bf16.msra.mxu0 %v872
    %943 = vmatprep.subr.bf16.mxu0 0
    %944 = vmatpush1.bf16.msra.mxu0 %v873
    %945 = vmatprep.subr.bf16.mxu0 0
    %946 = vmatpush1.bf16.msra.mxu0 %v874
    %947 = vmatprep.mubr.bf16.mxu0 %v708
    %948 = vmatmul.mubr.bf16.gmra.mrb[0].mxu0 %v707
    %v949 = vpop.f32.mrb[0].mxu0
    %v950 = vadd.f32 %v760, %v949
    %v951 = vpop.f32.mrb[0].mxu0
    %v952 = vpop.f32.mrb[0].mxu0
    %v953 = vpop.f32.mrb[0].mxu0
    %954 = vdwg.mxu0
    %955 = vmatprep.subr.bf16.mxu0 0
    %956 = vmatpush1.bf16.msra.mxu0 %v875
    %957 = vmatprep.subr.bf16.mxu0 0
    %958 = vmatpush1.bf16.msra.mxu0 %v876
    %959 = vmatprep.subr.bf16.mxu0 0
    %960 = vmatpush1.bf16.msra.mxu0 %v877
    %961 = vmatprep.subr.bf16.mxu0 0
    %962 = vmatpush1.bf16.msra.mxu0 %v878
    %963 = vmatprep.subr.bf16.mxu0 0
    %964 = vmatpush1.bf16.msra.mxu0 %v879
    %965 = vmatprep.subr.bf16.mxu0 0
    %966 = vmatpush1.bf16.msra.mxu0 %v880
    %967 = vmatprep.subr.bf16.mxu0 0
    %968 = vmatpush1.bf16.msra.mxu0 %v881
    %969 = vmatprep.subr.bf16.mxu0 0
    %970 = vmatpush1.bf16.msra.mxu0 %v882
    %971 = vmatprep.subr.bf16.mxu0 0
    %972 = vmatpush1.bf16.msra.mxu0 %v913
    %973 = vmatprep.subr.bf16.mxu0 0
    %974 = vmatpush1.bf16.msra.mxu0 0
    %975 = vmatprep.subr.bf16.mxu0 0
    %976 = vmatpush1.bf16.msra.mxu0 0
    %977 = vmatprep.subr.bf16.mxu0 0
    %978 = vmatpush1.bf16.msra.mxu0 0
    %979 = vmatprep.subr.bf16.mxu0 0
    %980 = vmatpush1.bf16.msra.mxu0 0
    %981 = vmatprep.subr.bf16.mxu0 0
    %982 = vmatpush1.bf16.msra.mxu0 0
    %983 = vmatprep.subr.bf16.mxu0 0
    %984 = vmatpush1.bf16.msra.mxu0 0
    %985 = vmatprep.subr.bf16.mxu0 0
    %986 = vmatpush1.bf16.msra.mxu0 0
    %987 = vmatprep.mubr.bf16.mxu0 %v910
    %988 = vmatmul.mubr.bf16.gmra.mrb[0].mxu0 %v709
    %v989 = vpop.f32.mrb[0].mxu0
    %v990 = vadd.f32 %v950, %v989
    %v991 = vpop.f32.mrb[0].mxu0
    %v992 = vpop.f32.mrb[0].mxu0
    %v993 = vpop.f32.mrb[0].mxu0
    %994 = vdwg.mxu0
    %v995 = vpack.c.bf16 %v990, %v990
    %v996 = vld [vmem:[%s2] sm:$0xff]
    %v997 = vld [vmem:[%s2 + $0x8] sm:$0xff]
    %v998 = vld [vmem:[%s2 + $0x10] sm:$0xff]
    %v999 = vld [vmem:[%s2 + $0x18] sm:$0xff]
    %s1000 = scalar_lea.vmem %s3, 3
    %v1001 = vld [vmem:[%s1000] ss:$8 sm:$0xf]
    %v1003 = vlaneseq
    %v1004 = vshrl.u32 %v1003, 7
    %v1005 = vsub.s32 0, %v1004
    %v1006 = vrot.slane %v1001, %v1005
    %v1007 = vlaneseq
    %v1008 = vshrl.u32 %v1007, 7
    %v1009 = vsub.s32 1, %v1008
    %v1010 = vrot.slane %v1001, %v1009
    %v1011 = vlaneseq
    %v1012 = vshrl.u32 %v1011, 7
    %v1013 = vsub.s32 2, %v1012
    %v1014 = vrot.slane %v1001, %v1013
    %v1015 = vlaneseq
    %v1016 = vshrl.u32 %v1015, 7
    %v1017 = vsub.s32 3, %v1016
    %v1018 = vrot.slane %v1001, %v1017
    %v1027 = vunpack.c.l.b16 %v996
    %v1028 = vunpack.c.h.b16 %v996
    %v1029 = vunpack.c.l.b16 %v997
    %v1030 = vunpack.c.h.b16 %v997
    %v1031 = vunpack.c.l.b16 %v998
    %v1032 = vunpack.c.h.b16 %v998
    %v1033 = vunpack.c.l.b16 %v999
    %v1034 = vunpack.c.h.b16 %v999
    %v1035 = vpack.c.b16 %v1031, %v1027
    %v1036 = vpack.c.b16 %v1032, %v1028
    %v1037 = vpack.c.b16 %v1033, %v1029
    %v1038 = vpack.c.b16 %v1034, %v1030
    %vm1043 = vcmask 130048
    %v1045 = vsel %vm1043, %v995, 0
    %1047 = vmatprep.subr.bf16.mxu0 %v1036
    %1048 = vmatpush1.bf16.msra.mxu0 %v1035
    %1049 = vmatprep.subr.bf16.mxu0 0
    %1050 = vmatpush1.bf16.msra.mxu0 0
    %1051 = vmatprep.subr.bf16.mxu0 0
    %1052 = vmatpush1.bf16.msra.mxu0 0
    %1053 = vmatprep.subr.bf16.mxu0 0
    %1054 = vmatpush1.bf16.msra.mxu0 0
    %1055 = vmatprep.subr.bf16.mxu0 0
    %1056 = vmatpush1.bf16.msra.mxu0 0
    %1057 = vmatprep.subr.bf16.mxu0 0
    %1058 = vmatpush1.bf16.msra.mxu0 0
    %1059 = vmatprep.subr.bf16.mxu0 0
    %1060 = vmatpush1.bf16.msra.mxu0 0
    %1061 = vmatprep.subr.bf16.mxu0 0
    %1062 = vmatpush1.bf16.msra.mxu0 0
    %1063 = vmatprep.subr.bf16.mxu0 0
    %1064 = vmatpush1.bf16.msra.mxu0 0
    %1065 = vmatprep.subr.bf16.mxu0 0
    %1066 = vmatpush1.bf16.msra.mxu0 0
    %1067 = vmatprep.subr.bf16.mxu0 0
    %1068 = vmatpush1.bf16.msra.mxu0 0
    %1069 = vmatprep.subr.bf16.mxu0 0
    %1070 = vmatpush1.bf16.msra.mxu0 0
    %1071 = vmatprep.subr.bf16.mxu0 0
    %1072 = vmatpush1.bf16.msra.mxu0 0
    %1073 = vmatprep.subr.bf16.mxu0 0
    %1074 = vmatpush1.bf16.msra.mxu0 0
    %1075 = vmatprep.subr.bf16.mxu0 0
    %1076 = vmatpush1.bf16.msra.mxu0 0
    %1077 = vmatprep.subr.bf16.mxu0 0
    %1078 = vmatpush1.bf16.msra.mxu0 0
    %1079 = vmatprep.mubr.bf16.mxu0 0
    %1080 = vmatmul.mubr.bf16.gmra.mrb[0].mxu0 %v1045
    %v1081 = vpop.f32.mrb[0].mxu0
    %v1082 = vadd.f32 %v1006, %v1081
    %v1083 = vpop.f32.mrb[0].mxu0
    %v1084 = vadd.f32 %v1010, %v1083
    %v1085 = vpop.f32.mrb[0].mxu0
    %v1086 = vpop.f32.mrb[0].mxu0
    %1087 = vdwg.mxu0
    %1088 = vmatprep.subr.bf16.mxu0 %v1038
    %1089 = vmatpush1.bf16.msra.mxu0 %v1037
    %1090 = vmatprep.subr.bf16.mxu0 0
    %1091 = vmatpush1.bf16.msra.mxu0 0
    %1092 = vmatprep.subr.bf16.mxu0 0
    %1093 = vmatpush1.bf16.msra.mxu0 0
    %1094 = vmatprep.subr.bf16.mxu0 0
    %1095 = vmatpush1.bf16.msra.mxu0 0
    %1096 = vmatprep.subr.bf16.mxu0 0
    %1097 = vmatpush1.bf16.msra.mxu0 0
    %1098 = vmatprep.subr.bf16.mxu0 0
    %1099 = vmatpush1.bf16.msra.mxu0 0
    %1100 = vmatprep.subr.bf16.mxu0 0
    %1101 = vmatpush1.bf16.msra.mxu0 0
    %1102 = vmatprep.subr.bf16.mxu0 0
    %1103 = vmatpush1.bf16.msra.mxu0 0
    %1104 = vmatprep.subr.bf16.mxu0 0
    %1105 = vmatpush1.bf16.msra.mxu0 0
    %1106 = vmatprep.subr.bf16.mxu0 0
    %1107 = vmatpush1.bf16.msra.mxu0 0
    %1108 = vmatprep.subr.bf16.mxu0 0
    %1109 = vmatpush1.bf16.msra.mxu0 0
    %1110 = vmatprep.subr.bf16.mxu0 0
    %1111 = vmatpush1.bf16.msra.mxu0 0
    %1112 = vmatprep.subr.bf16.mxu0 0
    %1113 = vmatpush1.bf16.msra.mxu0 0
    %1114 = vmatprep.subr.bf16.mxu0 0
    %1115 = vmatpush1.bf16.msra.mxu0 0
    %1116 = vmatprep.subr.bf16.mxu0 0
    %1117 = vmatpush1.bf16.msra.mxu0 0
    %1118 = vmatprep.subr.bf16.mxu0 0
    %1119 = vmatpush1.bf16.msra.mxu0 0
    %1120 = vmatprep.mubr.bf16.mxu0 0
    %1121 = vmatmul.mubr.bf16.gmra.mrb[0].mxu0 %v1045
    %v1122 = vpop.f32.mrb[0].mxu0
    %v1123 = vadd.f32 %v1014, %v1122
    %v1124 = vpop.f32.mrb[0].mxu0
    %v1125 = vadd.f32 %v1018, %v1124
    %v1126 = vpop.f32.mrb[0].mxu0
    %v1127 = vpop.f32.mrb[0].mxu0
    %1128 = vdwg.mxu0
    %v1129 = vmax.f32 %v1082, 0.0
    %v1130 = vmax.f32 %v1084, 0.0
    %v1131 = vmax.f32 %v1123, 0.0
    %v1132 = vmax.f32 %v1125, 0.0
    %v1134 = vrot.slane %v1129, 7
    %1135 = vrot.lane.b32.xlu0 %v1134, 72
    %v1136 = vpop.permute.xlu0 %1135
    %v1139 = vrot.slane %v1129, 6
    %v1140 = vrot.slane %v1130, 6
    %1141 = vrot.lane.b32.xlu0 %v1139, 16
    %v1142 = vpop.permute.xlu0 %1141
    %1143 = vrot.lane.b32.xlu0 %v1140, 16
    %v1144 = vpop.permute.xlu0 %1143
    %v1145 = vsel %vm1043, %v1142, %v1144
    %v1147 = vrot.slane %v1130, 5
    %1148 = vrot.lane.b32.xlu0 %v1147, 88
    %v1149 = vpop.permute.xlu0 %1148
    %v1152 = vrot.slane %v1130, 4
    %v1153 = vrot.slane %v1131, 4
    %1154 = vrot.lane.b32.xlu0 %v1152, 32
    %v1155 = vpop.permute.xlu0 %1154
    %1156 = vrot.lane.b32.xlu0 %v1153, 32
    %v1157 = vpop.permute.xlu0 %1156
    %vm1158 = vcmask 261120
    %v1159 = vsel %vm1158, %v1155, %v1157
    %v1161 = vrot.slane %v1131, 3
    %1162 = vrot.lane.b32.xlu0 %v1161, 104
    %v1163 = vpop.permute.xlu0 %1162
    %v1166 = vrot.slane %v1131, 2
    %v1167 = vrot.slane %v1132, 2
    %1168 = vrot.lane.b32.xlu0 %v1166, 48
    %v1169 = vpop.permute.xlu0 %1168
    %1170 = vrot.lane.b32.xlu0 %v1167, 48
    %v1171 = vpop.permute.xlu0 %1170
    %vm1172 = vcmask 392192
    %v1173 = vsel %vm1172, %v1169, %v1171
    %v1175 = vrot.slane %v1129, 2
    %v1177 = vrot.slane %v1129, 1
    %1178 = vrot.lane.b32.xlu0 %v1177, 72
    %v1179 = vpop.permute.xlu0 %1178
    %1181 = vrot.lane.b32.xlu0 %v1129, 16
    %v1182 = vpop.permute.xlu0 %1181
    %1183 = vrot.lane.b32.xlu0 %v1130, 16
    %v1184 = vpop.permute.xlu0 %1183
    %v1185 = vsel %vm1043, %v1182, %v1184
    %v1187 = vrot.slane %v1130, 7
    %1188 = vrot.lane.b32.xlu0 %v1187, 88
    %v1189 = vpop.permute.xlu0 %1188
    %v1191 = vrot.slane %v1131, 6
    %1192 = vrot.lane.b32.xlu0 %v1140, 32
    %v1193 = vpop.permute.xlu0 %1192
    %1194 = vrot.lane.b32.xlu0 %v1191, 32
    %v1195 = vpop.permute.xlu0 %1194
    %v1196 = vsel %vm1158, %v1193, %v1195
    %v1198 = vrot.slane %v1131, 5
    %1199 = vrot.lane.b32.xlu0 %v1198, 104
    %v1200 = vpop.permute.xlu0 %1199
    %v1202 = vrot.slane %v1132, 4
    %1203 = vrot.lane.b32.xlu0 %v1153, 48
    %v1204 = vpop.permute.xlu0 %1203
    %1205 = vrot.lane.b32.xlu0 %v1202, 48
    %v1206 = vpop.permute.xlu0 %1205
    %v1207 = vsel %vm1172, %v1204, %v1206
    %v1209 = vsel %vm702, %v1129, %v1136
    %vm1210 = vcmask 1041408
    %v1211 = vsel %vm1210, %v1209, %v1145
    %vm1212 = vcmask 1042432
    %v1213 = vsel %vm1212, %v1211, %v1149
    %v1214 = vsel %vm579, %v1213, %v1159
    %vm1215 = vcmask 1044480
    %v1216 = vsel %vm1215, %v1214, %v1163
    %v1217 = vsel %vm165, %v1216, %v1173
    %v1218 = vsel %vm452, %v1217, %v1175
    %v1219 = vsel %vm702, %v1179, %v1185
    %v1220 = vsel %vm1210, %v1219, %v1189
    %v1221 = vsel %vm1212, %v1220, %v1196
    %v1222 = vsel %vm579, %v1221, %v1200
    %v1223 = vsel %vm1215, %v1222, %v1207
    %v1224 = vpack.c.bf16 %v1223, %v1218
    %v1225 = vld [vmem:[#allocation4 + $0x198] sm:$0xf]
    %v1226 = vld [vmem:[#allocation4 + $0x19c] sm:$0xf]
    %v1227 = vld [vmem:[#allocation4 + $0x1a0] sm:$0xf]
    %v1228 = vld [vmem:[#allocation4 + $0x1a4] sm:$0xf]
    %v1229 = vld [vmem:[#allocation4 + $0x1a8] sm:$0xf]
    %v1230 = vld [vmem:[#allocation4 + $0x1ac] sm:$0xf]
    %v1231 = vld [vmem:[#allocation4 + $0x1b0] sm:$0xf]
    %v1232 = vld [vmem:[#allocation4 + $0x1b4] sm:$0xf]
    %v1233 = vld [vmem:[#allocation4 + $0x1b8] sm:$0xf]
    %v1234 = vld [vmem:[#allocation4 + $0x1bc] sm:$0xf]
    %v1235 = vld [vmem:[#allocation4 + $0x1c0] sm:$0x3]
    %v1247 = vunpack.c.l.b16 %v1225
    %v1248 = vunpack.c.l.b16 %v1226
    %v1249 = vunpack.c.l.b16 %v1227
    %v1250 = vunpack.c.l.b16 %v1228
    %v1251 = vunpack.c.l.b16 %v1229
    %v1252 = vunpack.c.l.b16 %v1230
    %v1253 = vunpack.c.l.b16 %v1231
    %v1254 = vunpack.c.l.b16 %v1232
    %v1255 = vunpack.c.l.b16 %v1233
    %v1256 = vunpack.c.l.b16 %v1234
    %v1257 = vunpack.c.l.b16 %v1235
    %v1258 = vpack.c.b16 %v1248, %v1247
    %v1259 = vpack.c.b16 %v1250, %v1249
    %v1260 = vpack.c.b16 %v1252, %v1251
    %v1261 = vpack.c.b16 %v1254, %v1253
    %v1262 = vpack.c.b16 %v1256, %v1255
    %v1263 = vpack.c.b16 %v1257, %v1257
    %vm1264 = vcmask 113664
    %v1266 = vsel %vm1264, %v1258, 0
    %v1269 = vsel %vm1264, %v1259, 0
    %v1272 = vsel %vm1264, %v1260, 0
    %v1275 = vsel %vm1264, %v1261, 0
    %v1278 = vsel %vm1264, %v1262, 0
    %v1281 = vsel %vm1264, %v1263, 0
    %v1284 = vsel %vm452, %v1224, 0
    %1286 = vmatprep.subr.bf16.mxu0 0
    %1287 = vmatpush1.bf16.msra.mxu0 %v1284
    %1288 = vmatprep.subr.bf16.mxu0 0
    %1289 = vmatpush1.bf16.msra.mxu0 0
    %1290 = vmatprep.subr.bf16.mxu0 0
    %1291 = vmatpush1.bf16.msra.mxu0 0
    %1292 = vmatprep.subr.bf16.mxu0 0
    %1293 = vmatpush1.bf16.msra.mxu0 0
    %1294 = vmatprep.subr.bf16.mxu0 0
    %1295 = vmatpush1.bf16.msra.mxu0 0
    %1296 = vmatprep.subr.bf16.mxu0 0
    %1297 = vmatpush1.bf16.msra.mxu0 0
    %1298 = vmatprep.subr.bf16.mxu0 0
    %1299 = vmatpush1.bf16.msra.mxu0 0
    %1300 = vmatprep.subr.bf16.mxu0 0
    %1301 = vmatpush1.bf16.msra.mxu0 0
    %1302 = vmatprep.subr.bf16.mxu0 0
    %1303 = vmatpush1.bf16.msra.mxu0 0
    %1304 = vmatprep.subr.bf16.mxu0 0
    %1305 = vmatpush1.bf16.msra.mxu0 0
    %1306 = vmatprep.subr.bf16.mxu0 0
    %1307 = vmatpush1.bf16.msra.mxu0 0
    %1308 = vmatprep.subr.bf16.mxu0 0
    %1309 = vmatpush1.bf16.msra.mxu0 0
    %1310 = vmatprep.subr.bf16.mxu0 0
    %1311 = vmatpush1.bf16.msra.mxu0 0
    %1312 = vmatprep.subr.bf16.mxu0 0
    %1313 = vmatpush1.bf16.msra.mxu0 0
    %1314 = vmatprep.subr.bf16.mxu0 0
    %1315 = vmatpush1.bf16.msra.mxu0 0
    %1316 = vmatprep.subr.bf16.mxu0 0
    %1317 = vmatpush1.bf16.msra.mxu0 0
    %1318 = vmatprep.mubr.bf16.mxu0 0
    %1319 = vmatmul.mubr.bf16.gmra.mrb[0].mxu0 %v1266
    %v1320 = vpop.f32.mrb[0].mxu0
    %v1321 = vadd.f32 0.0, %v1320
    %v1322 = vpop.f32.mrb[0].mxu0
    %v1323 = vpop.f32.mrb[0].mxu0
    %v1324 = vadd.f32 0.0, %v1323
    %v1325 = vpop.f32.mrb[0].mxu0
    %1326 = vmatprep.mubr.bf16.mxu0 0
    %1327 = vmatmul.mubr.bf16.gmra.mrb[0].mxu0 %v1269
    %v1328 = vpop.f32.mrb[0].mxu0
    %v1329 = vadd.f32 0.0, %v1328
    %v1330 = vpop.f32.mrb[0].mxu0
    %v1331 = vpop.f32.mrb[0].mxu0
    %v1332 = vadd.f32 0.0, %v1331
    %v1333 = vpop.f32.mrb[0].mxu0
    %1334 = vmatprep.mubr.bf16.mxu0 0
    %1335 = vmatmul.mubr.bf16.gmra.mrb[0].mxu0 %v1272
    %v1336 = vpop.f32.mrb[0].mxu0
    %v1337 = vadd.f32 0.0, %v1336
    %v1338 = vpop.f32.mrb[0].mxu0
    %v1339 = vpop.f32.mrb[0].mxu0
    %v1340 = vadd.f32 0.0, %v1339
    %v1341 = vpop.f32.mrb[0].mxu0
    %1342 = vmatprep.mubr.bf16.mxu0 0
    %1343 = vmatmul.mubr.bf16.gmra.mrb[0].mxu0 %v1275
    %v1344 = vpop.f32.mrb[0].mxu0
    %v1345 = vadd.f32 0.0, %v1344
    %v1346 = vpop.f32.mrb[0].mxu0
    %v1347 = vpop.f32.mrb[0].mxu0
    %v1348 = vadd.f32 0.0, %v1347
    %v1349 = vpop.f32.mrb[0].mxu0
    %1350 = vmatprep.mubr.bf16.mxu0 0
    %1351 = vmatmul.mubr.bf16.gmra.mrb[0].mxu0 %v1278
    %v1352 = vpop.f32.mrb[0].mxu0
    %v1353 = vadd.f32 0.0, %v1352
    %v1354 = vpop.f32.mrb[0].mxu0
    %v1355 = vpop.f32.mrb[0].mxu0
    %v1356 = vadd.f32 0.0, %v1355
    %v1357 = vpop.f32.mrb[0].mxu0
    %1358 = vmatprep.mubr.bf16.mxu0 0
    %1359 = vmatmul.mubr.bf16.gmra.mrb[0].mxu0 %v1281
    %v1360 = vpop.f32.mrb[0].mxu0
    %v1361 = vadd.f32 0.0, %v1360
    %v1362 = vpop.f32.mrb[0].mxu0
    %v1363 = vpop.f32.mrb[0].mxu0
    %v1364 = vpop.f32.mrb[0].mxu0
    %1365 = vdwg.mxu0
    %v1370 = vrot.slane %v1332, 4
    %v1371 = vrot.slane %v1337, 4
    %v1372 = vsel %vm579, %v1370, %v1371
    %v1373 = vrot.slane %v1340, 4
    %v1374 = vsel %vm579, %v1371, %v1373
    %v1375 = vrot.slane %v1345, 4
    %v1376 = vsel %vm579, %v1373, %v1375
    %1377 = vrot.lane.b32.xlu0 %v1372, 56
    %v1378 = vpop.permute.xlu0 %1377
    %1379 = vrot.lane.b32.xlu0 %v1374, 56
    %v1380 = vpop.permute.xlu0 %1379
    %1381 = vrot.lane.b32.xlu0 %v1376, 56
    %v1382 = vpop.permute.xlu0 %1381
    %1383 = vrot.lane.b32.xlu0 %v1375, 56
    %v1384 = vpop.permute.xlu0 %1383
    %1393 = vrot.lane.b32.xlu0 %v1348, 112
    %v1394 = vpop.permute.xlu0 %1393
    %1395 = vrot.lane.b32.xlu0 %v1353, 112
    %v1396 = vpop.permute.xlu0 %1395
    %1397 = vrot.lane.b32.xlu0 %v1356, 112
    %v1398 = vpop.permute.xlu0 %1397
    %1399 = vrot.lane.b32.xlu0 %v1361, 112
    %v1400 = vpop.permute.xlu0 %1399
    %v1405 = vsel %vm85, %v1321, %v1378
    %v1406 = vsel %vm85, %v1324, %v1380
    %v1407 = vsel %vm85, %v1329, %v1382
    %v1408 = vsel %vm85, %v1332, %v1384
    %v1409 = vsel %vm486, %v1405, %v1394
    %v1410 = vsel %vm486, %v1406, %v1396
    %v1411 = vsel %vm486, %v1407, %v1398
    %v1412 = vsel %vm486, %v1408, %v1400
    %v1413 = vpack.c.bf16 %v1410, %v1409
    %v1414 = vpack.c.bf16 %v1396, %v1394
    %v1415 = vpack.c.bf16 %v1412, %v1411
    %v1416 = vpack.c.bf16 %v1400, %v1398
    %v1417 = vld [vmem:[#allocation4 + $0x1c4] sm:$0xf]
    %v1418 = vld [vmem:[#allocation4 + $0x1c8] sm:$0xf]
    %v1419 = vld [vmem:[#allocation4 + $0x1cc] sm:$0xf]
    %v1420 = vld [vmem:[#allocation4 + $0x1d0] sm:$0xf]
    %v1421 = vld [vmem:[#allocation4 + $0x1d4] sm:$0xf]
    %v1422 = vld [vmem:[#allocation4 + $0x1d8] sm:$0xf]
    %v1423 = vld [vmem:[#allocation4 + $0x1dc] sm:$0xf]
    %v1424 = vld [vmem:[#allocation4 + $0x1e0] sm:$0xf]
    %v1425 = vld [vmem:[#allocation4 + $0x1e4] sm:$0xf]
    %v1426 = vld [vmem:[#allocation4 + $0x1e8] sm:$0xf]
    %v1427 = vld [vmem:[#allocation4 + $0x1ec] sm:$0xf]
    %v1428 = vld [vmem:[#allocation4 + $0x1f0] sm:$0xf]
    %v1429 = vld [vmem:[#allocation4 + $0x1f4] sm:$0xf]
    %v1430 = vld [vmem:[#allocation4 + $0x1f8] sm:$0xf]
    %v1431 = vld [vmem:[#allocation4 + $0x1fc] sm:$0xf]
    %v1432 = vld [vmem:[#allocation4 + $0x200] sm:$0xf]
    %v1433 = vld [vmem:[#allocation4 + $0x204] sm:$0xf]
    %v1434 = vld [vmem:[#allocation4 + $0x208] sm:$0xf]
    %v1435 = vld [vmem:[#allocation4 + $0x20c] sm:$0xf]
    %v1436 = vld [vmem:[#allocation4 + $0x210] sm:$0xf]
    %v1437 = vld [vmem:[#allocation4 + $0x214] sm:$0xf]
    %v1438 = vld [vmem:[%s3 + $0x4] ss:$0 sm:$0xff]
    %v1460 = vunpack.c.l.b16 %v1417
    %v1461 = vunpack.c.l.b16 %v1418
    %v1462 = vunpack.c.l.b16 %v1419
    %v1463 = vunpack.c.l.b16 %v1420
    %v1464 = vunpack.c.l.b16 %v1421
    %v1465 = vunpack.c.l.b16 %v1422
    %v1466 = vunpack.c.l.b16 %v1423
    %v1467 = vunpack.c.l.b16 %v1424
    %v1468 = vunpack.c.l.b16 %v1425
    %v1469 = vunpack.c.l.b16 %v1426
    %v1470 = vunpack.c.l.b16 %v1427
    %v1471 = vunpack.c.l.b16 %v1428
    %v1472 = vunpack.c.l.b16 %v1429
    %v1473 = vunpack.c.l.b16 %v1430
    %v1474 = vunpack.c.l.b16 %v1431
    %v1475 = vunpack.c.l.b16 %v1432
    %v1476 = vunpack.c.l.b16 %v1433
    %v1477 = vunpack.c.l.b16 %v1434
    %v1478 = vunpack.c.l.b16 %v1435
    %v1479 = vunpack.c.l.b16 %v1436
    %v1480 = vunpack.c.l.b16 %v1437
    %v1481 = vpack.c.b16 %v1461, %v1460
    %v1482 = vpack.c.b16 %v1463, %v1462
    %v1483 = vpack.c.b16 %v1465, %v1464
    %v1484 = vpack.c.b16 %v1467, %v1466
    %v1485 = vpack.c.b16 %v1469, %v1468
    %v1486 = vpack.c.b16 %v1471, %v1470
    %v1487 = vpack.c.b16 %v1473, %v1472
    %v1488 = vpack.c.b16 %v1475, %v1474
    %v1489 = vpack.c.b16 %v1477, %v1476
    %v1490 = vpack.c.b16 %v1479, %v1478
    %v1491 = vpack.c.b16 %v1480, %v1480
    %v1503 = vsel %vm235, %v1414, 0
    %v1506 = vsel %vm235, %v1416, 0
    %v1509 = vsel %vm579, %v1491, 0
    %1511 = vmatprep.subr.bf16.mxu0 0
    %1512 = vmatpush1.bf16.msra.mxu0 %v1481
    %1513 = vmatprep.subr.bf16.mxu0 0
    %1514 = vmatpush1.bf16.msra.mxu0 %v1482
    %1515 = vmatprep.subr.bf16.mxu0 0
    %1516 = vmatpush1.bf16.msra.mxu0 %v1483
    %1517 = vmatprep.subr.bf16.mxu0 0
    %1518 = vmatpush1.bf16.msra.mxu0 %v1484
    %1519 = vmatprep.subr.bf16.mxu0 0
    %1520 = vmatpush1.bf16.msra.mxu0 %v1485
    %1521 = vmatprep.subr.bf16.mxu0 0
    %1522 = vmatpush1.bf16.msra.mxu0 %v1486
    %1523 = vmatprep.subr.bf16.mxu0 0
    %1524 = vmatpush1.bf16.msra.mxu0 %v1487
    %1525 = vmatprep.subr.bf16.mxu0 0
    %1526 = vmatpush1.bf16.msra.mxu0 %v1488
    %1527 = vmatprep.subr.bf16.mxu0 0
    %1528 = vmatpush1.bf16.msra.mxu0 %v1489
    %1529 = vmatprep.subr.bf16.mxu0 0
    %1530 = vmatpush1.bf16.msra.mxu0 %v1490
    %1531 = vmatprep.subr.bf16.mxu0 0
    %1532 = vmatpush1.bf16.msra.mxu0 %v1509
    %1533 = vmatprep.subr.bf16.mxu0 0
    %1534 = vmatpush1.bf16.msra.mxu0 0
    %1535 = vmatprep.subr.bf16.mxu0 0
    %1536 = vmatpush1.bf16.msra.mxu0 0
    %1537 = vmatprep.subr.bf16.mxu0 0
    %1538 = vmatpush1.bf16.msra.mxu0 0
    %1539 = vmatprep.subr.bf16.mxu0 0
    %1540 = vmatpush1.bf16.msra.mxu0 0
    %1541 = vmatprep.subr.bf16.mxu0 0
    %1542 = vmatpush1.bf16.msra.mxu0 0
    %1543 = vmatprep.mubr.bf16.mxu0 %v1503
    %1544 = vmatmul.mubr.bf16.gmra.mrb[0].mxu0 %v1413
    %v1545 = vpop.f32.mrb[0].mxu0
    %v1546 = vadd.f32 %v1438, %v1545
    %v1547 = vpop.f32.mrb[0].mxu0
    %v1548 = vpop.f32.mrb[0].mxu0
    %v1549 = vadd.f32 %v1438, %v1548
    %v1550 = vpop.f32.mrb[0].mxu0
    %1551 = vmatprep.mubr.bf16.mxu0 %v1506
    %1552 = vmatmul.mubr.bf16.gmra.mrb[0].mxu0 %v1415
    %v1553 = vpop.f32.mrb[0].mxu0
    %v1554 = vadd.f32 %v1438, %v1553
    %v1555 = vpop.f32.mrb[0].mxu0
    %v1556 = vpop.f32.mrb[0].mxu0
    %v1557 = vadd.f32 %v1438, %v1556
    %v1558 = vpop.f32.mrb[0].mxu0
    %1559 = vdwg.mxu0
    %v1560 = vmax.f32 %v1546, 0.0
    %v1561 = vmax.f32 %v1549, 0.0
    %v1562 = vmax.f32 %v1554, 0.0
    %v1563 = vmax.f32 %v1557, 0.0
    %v1564 = vld [vmem:[#allocation4 + $0x218] sm:$0xf]
    %v1565 = vld [vmem:[#allocation4 + $0x21c] sm:$0xf]
    %v1566 = vld [vmem:[#allocation4 + $0x220] sm:$0xf]
    %v1567 = vld [vmem:[#allocation4 + $0x224] sm:$0xf]
    %v1568 = vld [vmem:[#allocation4 + $0x228] sm:$0xf]
    %v1569 = vld [vmem:[#allocation4 + $0x22c] sm:$0xf]
    %v1570 = vld [vmem:[#allocation4 + $0x230] sm:$0xf]
    %v1571 = vld [vmem:[#allocation4 + $0x234] sm:$0xf]
    %v1572 = vld [vmem:[#allocation4 + $0x238] sm:$0xf]
    %v1573 = vld [vmem:[#allocation4 + $0x23c] sm:$0xf]
    %v1574 = vld [vmem:[#allocation4 + $0x240] sm:$0xf]
    %v1575 = vld [vmem:[#allocation4 + $0x244] sm:$0xf]
    %v1576 = vld [vmem:[#allocation4 + $0x248] sm:$0xf]
    %v1577 = vld [vmem:[#allocation4 + $0x24c] sm:$0xf]
    %v1578 = vld [vmem:[#allocation4 + $0x250] sm:$0xf]
    %v1579 = vld [vmem:[#allocation4 + $0x254] sm:$0xf]
    %v1580 = vld [vmem:[#allocation4 + $0x258] sm:$0xf]
    %v1581 = vld [vmem:[#allocation4 + $0x25c] sm:$0xf]
    %v1582 = vld [vmem:[#allocation4 + $0x260] sm:$0xf]
    %v1583 = vld [vmem:[#allocation4 + $0x264] sm:$0xf]
    %v1584 = vld [vmem:[#allocation4 + $0x268] sm:$0xf]
    %v1585 = vpack.c.bf16 %v1561, %v1560
    %v1586 = vpack.c.bf16 %v1563, %v1562
    %v1608 = vunpack.c.l.b16 %v1564
    %v1609 = vunpack.c.l.b16 %v1565
    %v1610 = vunpack.c.l.b16 %v1566
    %v1611 = vunpack.c.l.b16 %v1567
    %v1612 = vunpack.c.l.b16 %v1568
    %v1613 = vunpack.c.l.b16 %v1569
    %v1614 = vunpack.c.l.b16 %v1570
    %v1615 = vunpack.c.l.b16 %v1571
    %v1616 = vunpack.c.l.b16 %v1572
    %v1617 = vunpack.c.l.b16 %v1573
    %v1618 = vunpack.c.l.b16 %v1574
    %v1619 = vunpack.c.l.b16 %v1575
    %v1620 = vunpack.c.l.b16 %v1576
    %v1621 = vunpack.c.l.b16 %v1577
    %v1622 = vunpack.c.l.b16 %v1578
    %v1623 = vunpack.c.l.b16 %v1579
    %v1624 = vunpack.c.l.b16 %v1580
    %v1625 = vunpack.c.l.b16 %v1581
    %v1626 = vunpack.c.l.b16 %v1582
    %v1627 = vunpack.c.l.b16 %v1583
    %v1628 = vunpack.c.l.b16 %v1584
    %v1629 = vpack.c.b16 %v1609, %v1608
    %v1630 = vpack.c.b16 %v1611, %v1610
    %v1631 = vpack.c.b16 %v1613, %v1612
    %v1632 = vpack.c.b16 %v1615, %v1614
    %v1633 = vpack.c.b16 %v1617, %v1616
    %v1634 = vpack.c.b16 %v1619, %v1618
    %v1635 = vpack.c.b16 %v1621, %v1620
    %v1636 = vpack.c.b16 %v1623, %v1622
    %v1637 = vpack.c.b16 %v1625, %v1624
    %v1638 = vpack.c.b16 %v1627, %v1626
    %v1639 = vpack.c.b16 %v1628, %v1628
    %v1641 = vsel %vm80, %v1629, 0
    %v1644 = vsel %vm80, %v1630, 0
    %v1647 = vsel %vm80, %v1631, 0
    %v1650 = vsel %vm80, %v1632, 0
    %v1653 = vsel %vm80, %v1633, 0
    %v1656 = vsel %vm80, %v1634, 0
    %v1659 = vsel %vm80, %v1635, 0
    %v1662 = vsel %vm80, %v1636, 0
    %v1665 = vsel %vm80, %v1637, 0
    %v1668 = vsel %vm80, %v1638, 0
    %v1671 = vsel %vm80, %v1639, 0
    %v1674 = vsel %vm165, %v1586, 0
    %1676 = vmatprep.subr.bf16.mxu0 0
    %1677 = vmatpush1.bf16.msra.mxu0 %v1585
    %1678 = vmatprep.subr.bf16.mxu0 0
    %1679 = vmatpush1.bf16.msra.mxu0 %v1674
    %1680 = vmatprep.subr.bf16.mxu0 0
    %1681 = vmatpush1.bf16.msra.mxu0 0
    %1682 = vmatprep.subr.bf16.mxu0 0
    %1683 = vmatpush1.bf16.msra.mxu0 0
    %1684 = vmatprep.subr.bf16.mxu0 0
    %1685 = vmatpush1.bf16.msra.mxu0 0
    %1686 = vmatprep.subr.bf16.mxu0 0
    %1687 = vmatpush1.bf16.msra.mxu0 0
    %1688 = vmatprep.subr.bf16.mxu0 0
    %1689 = vmatpush1.bf16.msra.mxu0 0
    %1690 = vmatprep.subr.bf16.mxu0 0
    %1691 = vmatpush1.bf16.msra.mxu0 0
    %1692 = vmatprep.subr.bf16.mxu0 0
    %1693 = vmatpush1.bf16.msra.mxu0 0
    %1694 = vmatprep.subr.bf16.mxu0 0
    %1695 = vmatpush1.bf16.msra.mxu0 0
    %1696 = vmatprep.subr.bf16.mxu0 0
    %1697 = vmatpush1.bf16.msra.mxu0 0
    %1698 = vmatprep.subr.bf16.mxu0 0
    %1699 = vmatpush1.bf16.msra.mxu0 0
    %1700 = vmatprep.subr.bf16.mxu0 0
    %1701 = vmatpush1.bf16.msra.mxu0 0
    %1702 = vmatprep.subr.bf16.mxu0 0
    %1703 = vmatpush1.bf16.msra.mxu0 0
    %1704 = vmatprep.subr.bf16.mxu0 0
    %1705 = vmatpush1.bf16.msra.mxu0 0
    %1706 = vmatprep.subr.bf16.mxu0 0
    %1707 = vmatpush1.bf16.msra.mxu0 0
    %1708 = vmatprep.mubr.bf16.mxu0 0
    %1709 = vmatmul.mubr.bf16.gmra.mrb[0].mxu0 %v1641
    %v1710 = vpop.f32.mrb[0].mxu0
    %v1711 = vadd.f32 0.0, %v1710
    %v1712 = vpop.f32.mrb[0].mxu0
    %v1713 = vpop.f32.mrb[0].mxu0
    %v1714 = vadd.f32 0.0, %v1713
    %v1715 = vpop.f32.mrb[0].mxu0
    %1716 = vmatprep.mubr.bf16.mxu0 0
    %1717 = vmatmul.mubr.bf16.gmra.mrb[0].mxu0 %v1644
    %v1718 = vpop.f32.mrb[0].mxu0
    %v1719 = vadd.f32 0.0, %v1718
    %v1720 = vpop.f32.mrb[0].mxu0
    %v1721 = vpop.f32.mrb[0].mxu0
    %v1722 = vadd.f32 0.0, %v1721
    %v1723 = vpop.f32.mrb[0].mxu0
    %1724 = vmatprep.mubr.bf16.mxu0 0
    %1725 = vmatmul.mubr.bf16.gmra.mrb[0].mxu0 %v1647
    %v1726 = vpop.f32.mrb[0].mxu0
    %v1727 = vadd.f32 0.0, %v1726
    %v1728 = vpop.f32.mrb[0].mxu0
    %v1729 = vpop.f32.mrb[0].mxu0
    %v1730 = vadd.f32 0.0, %v1729
    %v1731 = vpop.f32.mrb[0].mxu0
    %1732 = vmatprep.mubr.bf16.mxu0 0
    %1733 = vmatmul.mubr.bf16.gmra.mrb[0].mxu0 %v1650
    %v1734 = vpop.f32.mrb[0].mxu0
    %v1735 = vadd.f32 0.0, %v1734
    %v1736 = vpop.f32.mrb[0].mxu0
    %v1737 = vpop.f32.mrb[0].mxu0
    %v1738 = vadd.f32 0.0, %v1737
    %v1739 = vpop.f32.mrb[0].mxu0
    %1740 = vmatprep.mubr.bf16.mxu0 0
    %1741 = vmatmul.mubr.bf16.gmra.mrb[0].mxu0 %v1653
    %v1742 = vpop.f32.mrb[0].mxu0
    %v1743 = vadd.f32 0.0, %v1742
    %v1744 = vpop.f32.mrb[0].mxu0
    %v1745 = vpop.f32.mrb[0].mxu0
    %v1746 = vadd.f32 0.0, %v1745
    %v1747 = vpop.f32.mrb[0].mxu0
    %1748 = vmatprep.mubr.bf16.mxu0 0
    %1749 = vmatmul.mubr.bf16.gmra.mrb[0].mxu0 %v1656
    %v1750 = vpop.f32.mrb[0].mxu0
    %v1751 = vadd.f32 0.0, %v1750
    %v1752 = vpop.f32.mrb[0].mxu0
    %v1753 = vpop.f32.mrb[0].mxu0
    %v1754 = vadd.f32 0.0, %v1753
    %v1755 = vpop.f32.mrb[0].mxu0
    %1756 = vmatprep.mubr.bf16.mxu0 0
    %1757 = vmatmul.mubr.bf16.gmra.mrb[0].mxu0 %v1659
    %v1758 = vpop.f32.mrb[0].mxu0
    %v1759 = vadd.f32 0.0, %v1758
    %v1760 = vpop.f32.mrb[0].mxu0
    %v1761 = vpop.f32.mrb[0].mxu0
    %v1762 = vadd.f32 0.0, %v1761
    %v1763 = vpop.f32.mrb[0].mxu0
    %1764 = vmatprep.mubr.bf16.mxu0 0
    %1765 = vmatmul.mubr.bf16.gmra.mrb[0].mxu0 %v1662
    %v1766 = vpop.f32.mrb[0].mxu0
    %v1767 = vadd.f32 0.0, %v1766
    %v1768 = vpop.f32.mrb[0].mxu0
    %v1769 = vpop.f32.mrb[0].mxu0
    %v1770 = vadd.f32 0.0, %v1769
    %v1771 = vpop.f32.mrb[0].mxu0
    %1772 = vmatprep.mubr.bf16.mxu0 0
    %1773 = vmatmul.mubr.bf16.gmra.mrb[0].mxu0 %v1665
    %v1774 = vpop.f32.mrb[0].mxu0
    %v1775 = vadd.f32 0.0, %v1774
    %v1776 = vpop.f32.mrb[0].mxu0
    %v1777 = vpop.f32.mrb[0].mxu0
    %v1778 = vadd.f32 0.0, %v1777
    %v1779 = vpop.f32.mrb[0].mxu0
    %1780 = vmatprep.mubr.bf16.mxu0 0
    %1781 = vmatmul.mubr.bf16.gmra.mrb[0].mxu0 %v1668
    %v1782 = vpop.f32.mrb[0].mxu0
    %v1783 = vadd.f32 0.0, %v1782
    %v1784 = vpop.f32.mrb[0].mxu0
    %v1785 = vpop.f32.mrb[0].mxu0
    %v1786 = vadd.f32 0.0, %v1785
    %v1787 = vpop.f32.mrb[0].mxu0
    %1788 = vmatprep.mubr.bf16.mxu0 0
    %1789 = vmatmul.mubr.bf16.gmra.mrb[0].mxu0 %v1671
    %v1790 = vpop.f32.mrb[0].mxu0
    %v1791 = vadd.f32 0.0, %v1790
    %v1792 = vpop.f32.mrb[0].mxu0
    %v1793 = vpop.f32.mrb[0].mxu0
    %v1794 = vpop.f32.mrb[0].mxu0
    %1795 = vdwg.mxu0
    %1803 = vrot.lane.b32.xlu0 %v1738, 56
    %v1804 = vpop.permute.xlu0 %1803
    %1805 = vrot.lane.b32.xlu0 %v1743, 56
    %v1806 = vpop.permute.xlu0 %1805
    %1807 = vrot.lane.b32.xlu0 %v1746, 56
    %v1808 = vpop.permute.xlu0 %1807
    %1809 = vrot.lane.b32.xlu0 %v1751, 56
    %v1810 = vpop.permute.xlu0 %1809
    %1811 = vrot.lane.b32.xlu0 %v1754, 56
    %v1812 = vpop.permute.xlu0 %1811
    %1813 = vrot.lane.b32.xlu0 %v1759, 56
    %v1814 = vpop.permute.xlu0 %1813
    %1815 = vrot.lane.b32.xlu0 %v1762, 56
    %v1816 = vpop.permute.xlu0 %1815
    %1831 = vrot.lane.b32.xlu0 %v1767, 112
    %v1832 = vpop.permute.xlu0 %1831
    %1833 = vrot.lane.b32.xlu0 %v1770, 112
    %v1834 = vpop.permute.xlu0 %1833
    %1835 = vrot.lane.b32.xlu0 %v1775, 112
    %v1836 = vpop.permute.xlu0 %1835
    %1837 = vrot.lane.b32.xlu0 %v1778, 112
    %v1838 = vpop.permute.xlu0 %1837
    %1839 = vrot.lane.b32.xlu0 %v1783, 112
    %v1840 = vpop.permute.xlu0 %1839
    %1841 = vrot.lane.b32.xlu0 %v1786, 112
    %v1842 = vpop.permute.xlu0 %1841
    %1843 = vrot.lane.b32.xlu0 %v1791, 112
    %v1844 = vpop.permute.xlu0 %1843
    %v1852 = vsel %vm85, %v1711, %v1804
    %v1853 = vsel %vm85, %v1714, %v1806
    %v1854 = vsel %vm85, %v1719, %v1808
    %v1855 = vsel %vm85, %v1722, %v1810
    %v1856 = vsel %vm85, %v1727, %v1812
    %v1857 = vsel %vm85, %v1730, %v1814
    %v1858 = vsel %vm85, %v1735, %v1816
    %v1859 = vsel %vm486, %v1852, %v1832
    %v1860 = vsel %vm486, %v1853, %v1834
    %v1861 = vsel %vm486, %v1854, %v1836
    %v1862 = vsel %vm486, %v1855, %v1838
    %v1863 = vsel %vm486, %v1856, %v1840
    %v1864 = vsel %vm486, %v1857, %v1842
    %v1865 = vsel %vm486, %v1858, %v1844
    %v1866 = vpack.c.bf16 %v1860, %v1859
    %v1867 = vpack.c.bf16 %v1834, %v1832
    %v1868 = vpack.c.bf16 %v1862, %v1861
    %v1869 = vpack.c.bf16 %v1838, %v1836
    %v1870 = vpack.c.bf16 %v1864, %v1863
    %v1871 = vpack.c.bf16 %v1842, %v1840
    %v1872 = vpack.c.bf16 %v1865, %v1865
    %v1873 = vpack.c.bf16 %v1844, %v1844
    %v1874 = vld [vmem:[#allocation4 + $0x26c] sm:$0xf]
    %v1875 = vld [vmem:[#allocation4 + $0x270] sm:$0xf]
    %v1876 = vld [vmem:[#allocation4 + $0x274] sm:$0xf]
    %v1877 = vld [vmem:[#allocation4 + $0x278] sm:$0xf]
    %v1878 = vld [vmem:[#allocation4 + $0x27c] sm:$0xf]
    %v1879 = vld [vmem:[#allocation4 + $0x280] sm:$0xf]
    %v1880 = vld [vmem:[#allocation4 + $0x284] sm:$0xf]
    %v1881 = vld [vmem:[#allocation4 + $0x288] sm:$0xf]
    %v1882 = vld [vmem:[#allocation4 + $0x28c] sm:$0xf]
    %v1883 = vld [vmem:[#allocation4 + $0x290] sm:$0xf]
    %v1884 = vld [vmem:[#allocation4 + $0x294] sm:$0xf]
    %v1885 = vld [vmem:[#allocation4 + $0x298] sm:$0xf]
    %v1886 = vld [vmem:[#allocation4 + $0x29c] sm:$0xf]
    %v1887 = vld [vmem:[#allocation4 + $0x2a0] sm:$0xf]
    %v1888 = vld [vmem:[#allocation4 + $0x2a4] sm:$0xf]
    %v1889 = vld [vmem:[#allocation4 + $0x2a8] sm:$0xf]
    %v1890 = vld [vmem:[#allocation4 + $0x2ac] sm:$0xf]
    %v1891 = vld [vmem:[#allocation4 + $0x2b0] sm:$0xf]
    %v1892 = vld [vmem:[#allocation4 + $0x2b4] sm:$0xf]
    %v1893 = vld [vmem:[#allocation4 + $0x2b8] sm:$0xf]
    %v1894 = vld [vmem:[#allocation4 + $0x2bc] sm:$0xf]
    %v1895 = vld [vmem:[%s3 + $0x5] ss:$0 sm:$0xff]
    %v1917 = vunpack.c.l.b16 %v1874
    %v1918 = vunpack.c.l.b16 %v1875
    %v1919 = vunpack.c.l.b16 %v1876
    %v1920 = vunpack.c.l.b16 %v1877
    %v1921 = vunpack.c.l.b16 %v1878
    %v1922 = vunpack.c.l.b16 %v1879
    %v1923 = vunpack.c.l.b16 %v1880
    %v1924 = vunpack.c.l.b16 %v1881
    %v1925 = vunpack.c.l.b16 %v1882
    %v1926 = vunpack.c.l.b16 %v1883
    %v1927 = vunpack.c.l.b16 %v1884
    %v1928 = vunpack.c.l.b16 %v1885
    %v1929 = vunpack.c.l.b16 %v1886
    %v1930 = vunpack.c.l.b16 %v1887
    %v1931 = vunpack.c.l.b16 %v1888
    %v1932 = vunpack.c.l.b16 %v1889
    %v1933 = vunpack.c.l.b16 %v1890
    %v1934 = vunpack.c.l.b16 %v1891
    %v1935 = vunpack.c.l.b16 %v1892
    %v1936 = vunpack.c.l.b16 %v1893
    %v1937 = vunpack.c.l.b16 %v1894
    %v1938 = vpack.c.b16 %v1918, %v1917
    %v1939 = vpack.c.b16 %v1920, %v1919
    %v1940 = vpack.c.b16 %v1922, %v1921
    %v1941 = vpack.c.b16 %v1924, %v1923
    %v1942 = vpack.c.b16 %v1926, %v1925
    %v1943 = vpack.c.b16 %v1928, %v1927
    %v1944 = vpack.c.b16 %v1930, %v1929
    %v1945 = vpack.c.b16 %v1932, %v1931
    %v1946 = vpack.c.b16 %v1934, %v1933
    %v1947 = vpack.c.b16 %v1936, %v1935
    %v1948 = vpack.c.b16 %v1937, %v1937
    %v1960 = vsel %vm235, %v1867, 0
    %v1963 = vsel %vm235, %v1869, 0
    %v1966 = vsel %vm235, %v1871, 0
    %v1969 = vsel %vm235, %v1873, 0
    %v1972 = vsel %vm579, %v1948, 0
    %1974 = vmatprep.subr.bf16.mxu0 0
    %1975 = vmatpush1.bf16.msra.mxu0 %v1938
    %1976 = vmatprep.subr.bf16.mxu0 0
    %1977 = vmatpush1.bf16.msra.mxu0 %v1939
    %1978 = vmatprep.subr.bf16.mxu0 0
    %1979 = vmatpush1.bf16.msra.mxu0 %v1940
    %1980 = vmatprep.subr.bf16.mxu0 0
    %1981 = vmatpush1.bf16.msra.mxu0 %v1941
    %1982 = vmatprep.subr.bf16.mxu0 0
    %1983 = vmatpush1.bf16.msra.mxu0 %v1942
    %1984 = vmatprep.subr.bf16.mxu0 0
    %1985 = vmatpush1.bf16.msra.mxu0 %v1943
    %1986 = vmatprep.subr.bf16.mxu0 0
    %1987 = vmatpush1.bf16.msra.mxu0 %v1944
    %1988 = vmatprep.subr.bf16.mxu0 0
    %1989 = vmatpush1.bf16.msra.mxu0 %v1945
    %1990 = vmatprep.subr.bf16.mxu0 0
    %1991 = vmatpush1.bf16.msra.mxu0 %v1946
    %1992 = vmatprep.subr.bf16.mxu0 0
    %1993 = vmatpush1.bf16.msra.mxu0 %v1947
    %1994 = vmatprep.subr.bf16.mxu0 0
    %1995 = vmatpush1.bf16.msra.mxu0 %v1972
    %1996 = vmatprep.subr.bf16.mxu0 0
    %1997 = vmatpush1.bf16.msra.mxu0 0
    %1998 = vmatprep.subr.bf16.mxu0 0
    %1999 = vmatpush1.bf16.msra.mxu0 0
    %2000 = vmatprep.subr.bf16.mxu0 0
    %2001 = vmatpush1.bf16.msra.mxu0 0
    %2002 = vmatprep.subr.bf16.mxu0 0
    %2003 = vmatpush1.bf16.msra.mxu0 0
    %2004 = vmatprep.subr.bf16.mxu0 0
    %2005 = vmatpush1.bf16.msra.mxu0 0
    %2006 = vmatprep.mubr.bf16.mxu0 %v1960
    %2007 = vmatmul.mubr.bf16.gmra.mrb[0].mxu0 %v1866
    %v2008 = vpop.f32.mrb[0].mxu0
    %v2009 = vadd.f32 %v1895, %v2008
    %v2010 = vpop.f32.mrb[0].mxu0
    %v2011 = vpop.f32.mrb[0].mxu0
    %v2012 = vadd.f32 %v1895, %v2011
    %v2013 = vpop.f32.mrb[0].mxu0
    %2014 = vmatprep.mubr.bf16.mxu0 %v1963
    %2015 = vmatmul.mubr.bf16.gmra.mrb[0].mxu0 %v1868
    %v2016 = vpop.f32.mrb[0].mxu0
    %v2017 = vadd.f32 %v1895, %v2016
    %v2018 = vpop.f32.mrb[0].mxu0
    %v2019 = vpop.f32.mrb[0].mxu0
    %v2020 = vadd.f32 %v1895, %v2019
    %v2021 = vpop.f32.mrb[0].mxu0
    %2022 = vmatprep.mubr.bf16.mxu0 %v1966
    %2023 = vmatmul.mubr.bf16.gmra.mrb[0].mxu0 %v1870
    %v2024 = vpop.f32.mrb[0].mxu0
    %v2025 = vadd.f32 %v1895, %v2024
    %v2026 = vpop.f32.mrb[0].mxu0
    %v2027 = vpop.f32.mrb[0].mxu0
    %v2028 = vadd.f32 %v1895, %v2027
    %v2029 = vpop.f32.mrb[0].mxu0
    %2030 = vmatprep.mubr.bf16.mxu0 %v1969
    %2031 = vmatmul.mubr.bf16.gmra.mrb[0].mxu0 %v1872
    %v2032 = vpop.f32.mrb[0].mxu0
    %v2033 = vadd.f32 %v1895, %v2032
    %v2034 = vpop.f32.mrb[0].mxu0
    %v2035 = vpop.f32.mrb[0].mxu0
    %v2036 = vpop.f32.mrb[0].mxu0
    %2037 = vdwg.mxu0
    %v2038 = vsub.f32 0.0, %v2009
    %v2039 = vsub.f32 0.0, %v2012
    %v2040 = vsub.f32 0.0, %v2017
    %v2041 = vsub.f32 0.0, %v2020
    %v2042 = vsub.f32 0.0, %v2025
    %v2043 = vsub.f32 0.0, %v2028
    %v2044 = vsub.f32 0.0, %v2033
    %v2045 = vmul.f32 %v2038, 1.442695
    %v2046 = vpow.pop %v2045
    %v2047 = vmul.f32 %v2039, 1.442695
    %v2048 = vpow.pop %v2047
    %v2049 = vmul.f32 %v2040, 1.442695
    %v2050 = vpow.pop %v2049
    %v2051 = vmul.f32 %v2041, 1.442695
    %v2052 = vpow.pop %v2051
    %v2053 = vmul.f32 %v2042, 1.442695
    %v2054 = vpow.pop %v2053
    %v2055 = vmul.f32 %v2043, 1.442695
    %v2056 = vpow.pop %v2055
    %v2057 = vmul.f32 %v2044, 1.442695
    %v2058 = vpow.pop %v2057
    %v2059 = vadd.f32 %v2046, 1.0
    %v2060 = vadd.f32 %v2048, 1.0
    %v2061 = vadd.f32 %v2050, 1.0
    %v2062 = vadd.f32 %v2052, 1.0
    %v2063 = vadd.f32 %v2054, 1.0
    %v2064 = vadd.f32 %v2056, 1.0
    %v2065 = vadd.f32 %v2058, 1.0
    %v2066 = vrcp.pop %v2059
    %v2067 = vrcp.pop %v2060
    %v2068 = vrcp.pop %v2061
    %v2069 = vrcp.pop %v2062
    %v2070 = vrcp.pop %v2063
    %v2071 = vrcp.pop %v2064
    %v2072 = vrcp.pop %v2065
    %2073 = vst.msk [vmem:[%s4] sm:$0xff] %vm80, %v2066
    %2074 = vst.msk [vmem:[%s4 + $0x8] sm:$0xff] %vm80, %v2067
    %2075 = vst.msk [vmem:[%s4 + $0x10] sm:$0xff] %vm80, %v2068
    %vm2076 = vcmask 224256
    %2077 = vst.msk [vmem:[%s4 + $0x18] sm:$0xf] %vm2076, %v2069
    %2082 = vrot.lane.b32.xlu0 %v2066, 100
    %v2083 = vpop.permute.xlu0 %2082
    %2084 = vrot.lane.b32.xlu0 %v2067, 100
    %v2085 = vpop.permute.xlu0 %2084
    %2086 = vrot.lane.b32.xlu0 %v2068, 100
    %v2087 = vpop.permute.xlu0 %2086
    %2088 = vrot.lane.b32.xlu0 %v2069, 100
    %v2089 = vpop.permute.xlu0 %2088
    %s2094 = scalar_lea.vmem %s4, 32
    %2095 = vst.msk [vmem:[%s2094] sm:$0xff] %vm80, %v2083
    %2096 = vst.msk [vmem:[%s2094 + $0x8] sm:$0xff] %vm80, %v2085
    %2097 = vst.msk [vmem:[%s2094 + $0x10] sm:$0xff] %vm80, %v2087
    %2098 = vst.msk [vmem:[%s2094 + $0x18] sm:$0xf] %vm2076, %v2089
    %2099 = vrot.lane.b32.xlu0 %v2066, 72
    %v2100 = vpop.permute.xlu0 %2099
    %2101 = vrot.lane.b32.xlu0 %v2067, 72
    %v2102 = vpop.permute.xlu0 %2101
    %2103 = vrot.lane.b32.xlu0 %v2068, 72
    %v2104 = vpop.permute.xlu0 %2103
    %2105 = vrot.lane.b32.xlu0 %v2069, 72
    %v2106 = vpop.permute.xlu0 %2105
    %s2111 = scalar_lea.vmem %s4, 64
    %2112 = vst.msk [vmem:[%s2111] sm:$0xff] %vm80, %v2100
    %2113 = vst.msk [vmem:[%s2111 + $0x8] sm:$0xff] %vm80, %v2102
    %2114 = vst.msk [vmem:[%s2111 + $0x10] sm:$0xff] %vm80, %v2104
    %2115 = vst.msk [vmem:[%s2111 + $0x18] sm:$0xf] %vm2076, %v2106
    %s2116 = scalar_lea.vmem %s4, 96
    %vm2117 = vcmask 228356
    %2118 = vst.msk [vmem:[%s2116 - $0x4] sm:$0xf0] %vm2117, %v2069
    %2119 = vst.msk [vmem:[%s2116 + $0x4] sm:$0xff] %vm80, %v2070
    %2120 = vst.msk [vmem:[%s2116 + $0xc] sm:$0xff] %vm80, %v2071
    %2121 = vst.msk [vmem:[%s2116 + $0x14] sm:$0xff] %vm80, %v2072
    %2125 = vrot.lane.b32.xlu0 %v2070, 100
    %v2126 = vpop.permute.xlu0 %2125
    %2127 = vrot.lane.b32.xlu0 %v2071, 100
    %v2128 = vpop.permute.xlu0 %2127
    %2129 = vrot.lane.b32.xlu0 %v2072, 100
    %v2130 = vpop.permute.xlu0 %2129
    %s2134 = scalar_lea.vmem %s4, 128
    %2135 = vst.msk [vmem:[%s2134 - $0x4] sm:$0xf0] %vm2117, %v2089
    %2136 = vst.msk [vmem:[%s2134 + $0x4] sm:$0xff] %vm80, %v2126
    %2137 = vst.msk [vmem:[%s2134 + $0xc] sm:$0xff] %vm80, %v2128
    %2138 = vst.msk [vmem:[%s2134 + $0x14] sm:$0xff] %vm80, %v2130
    %2139 = vrot.lane.b32.xlu0 %v2070, 72
    %v2140 = vpop.permute.xlu0 %2139
    %2141 = vrot.lane.b32.xlu0 %v2071, 72
    %v2142 = vpop.permute.xlu0 %2141
    %2143 = vrot.lane.b32.xlu0 %v2072, 72
    %v2144 = vpop.permute.xlu0 %2143
    %s2148 = scalar_lea.vmem %s4, 160
    %2149 = vst.msk [vmem:[%s2148 - $0x4] sm:$0xf0] %vm2117, %v2106
    %2150 = vst.msk [vmem:[%s2148 + $0x4] sm:$0xff] %vm80, %v2140
    %2151 = vst.msk [vmem:[%s2148 + $0xc] sm:$0xff] %vm80, %v2142
    %2152 = vst.msk [vmem:[%s2148 + $0x14] sm:$0xff] %vm80, %v2144
    // Predicated region
    $region22: #{forward.1} parent=1 // pred_check
      _
    $region23: #{forward.1} parent=1 // pred_check_branch
      %2154 = sbr.rel (0) target = $region25
    $region24: #{forward.1} parent=1 // pred_region
      _
    $region25: #{forward.1} parent=1 // pred_fallthru
      _
    // Predicated region
    $region26: #{forward.1} parent=1 // pred_check
      _
    $region27: #{forward.1} parent=1 // pred_check_branch
      %2156 = sbr.rel (0) target = $region29
    $region28: #{forward.1} parent=1 // pred_region
      _
    $region29: #{forward.1} parent=1 // pred_fallthru
      _
    %2157 = vsyncpa [#allocation5], 1

</llo_original>
